<compile_context>
chip_gen: v6e
topology: v6e:2x2x1
jax: 0.10.0
libtpu: 0.0.40
codegen_flags: <defaults>
</compile_context>

<pallas_src>
import functools

import jax
import jax.numpy as jnp
from jax.experimental import pallas as pl
from jax.experimental.pallas import tpu as pltpu


# ----------------------------------------------------------------------------- helpers
def _round_up(v, m):
    return ((v + m - 1) // m) * m


def _device_vmem_bytes():
    try:
        return int(pltpu.get_tpu_info().vmem_capacity_bytes)
    except Exception:
        return 128 * 1024 * 1024


def _layernorm_f32(x, w, b, eps=1e-5):
    """CLIP LayerNorm: always computed in fp32; returns fp32."""
    xf = x.astype(jnp.float32)
    mu = jnp.mean(xf, axis=-1, keepdims=True)
    var = jnp.mean(jnp.square(xf - mu), axis=-1, keepdims=True)
    y = (xf - mu) * jax.lax.rsqrt(var + eps)
    return y * w.astype(jnp.float32) + b.astype(jnp.float32)


# ----------------------------------------------------------------------------- kernel
def _resblock_kernel(n_head, tile_ff,
                     x_ref, mask_ref,
                     ln1_w_ref, ln1_b_ref,
                     wqkv_ref, bqkv_ref, wo_ref, bo_ref,
                     ln2_w_ref, ln2_b_ref,
                     wfc_ref, bfc_ref, wproj_ref, bproj_ref,
                     o_ref):
    f32, bf16 = jnp.float32, jnp.bfloat16
    Bb, L, D = x_ref.shape
    hd = D // n_head
    rows = Bb * L

    # Residual stream kept in fp32 for the whole block.
    x = x_ref[...].astype(f32).reshape(rows, D)

    # --- attention branch: x + out_proj(MHA(LN1(x))) ---
    h = _layernorm_f32(x, ln1_w_ref[...], ln1_b_ref[...])
    # 1/sqrt(head_dim) is pre-folded into the q columns of wqkv/bqkv (prepare_params).
    qkv = jnp.dot(h.astype(bf16), wqkv_ref[...],
                  preferred_element_type=f32) + bqkv_ref[...].astype(f32)
    qkv_b = qkv.reshape(Bb, L, 3 * D).astype(bf16)       # single f32->bf16 pass
    mask = mask_ref[...].astype(f32)                     # (L, L), broadcast in the add

    # Per-head scores / softmax / PV (single-batch-dim einsums), then one K=D
    # output projection over the concatenated heads.
    o_heads = []
    for hi in range(n_head):                              # static, unrolled over heads
        q_h = qkv_b[:, :, hi * hd:(hi + 1) * hd]                       # (Bb, L, hd)
        k_h = qkv_b[:, :, D + hi * hd:D + (hi + 1) * hd]
        v_h = qkv_b[:, :, 2 * D + hi * hd:2 * D + (hi + 1) * hd]
        s = jnp.einsum('bqd,bkd->bqk', q_h, k_h,
                       preferred_element_type=f32) + mask               # (Bb, L, L)
        s = s - jnp.max(s, axis=-1, keepdims=True)
        e = jnp.exp(s)
        p = e * pl.reciprocal(jnp.sum(e, axis=-1, keepdims=True), approx=True)
        o_heads.append(jnp.einsum('bqk,bkd->bqd', p.astype(bf16), v_h,
                                  preferred_element_type=f32))          # (Bb, L, hd)
    o_all = jnp.concatenate(o_heads, axis=-1).reshape(rows, D)          # (rows, D)
    attn = jnp.dot(o_all.astype(bf16), wo_ref[...], preferred_element_type=f32)
    x1 = x + attn + bo_ref[...].astype(f32)

    # --- MLP branch: x + c_proj(QuickGELU(c_fc(LN2(x)))) ---
    # Computed in (rows, tile_ff) slabs to bound the live ff intermediate.
    h2 = _layernorm_f32(x1, ln2_w_ref[...], ln2_b_ref[...]).astype(bf16)
    ff_dim = wfc_ref.shape[1]
    mlp = jnp.zeros((rows, D), f32)
    for f0 in range(0, ff_dim, tile_ff):
        fsl = slice(f0, f0 + tile_ff)
        ff = jnp.dot(h2, wfc_ref[:, fsl],
                     preferred_element_type=f32) + bfc_ref[:, fsl].astype(f32)
        ff = ff * jax.nn.sigmoid(1.702 * ff)                            # QuickGELU
        mlp = mlp + jnp.dot(ff.astype(bf16), wproj_ref[fsl, :],
                            preferred_element_type=f32)
    out = x1 + mlp + bproj_ref[...].astype(f32)

    o_ref[...] = out.reshape(Bb, L, D).astype(o_ref.dtype)


# ----------------------------------------------------------------------------- tiling
def _pick_block_batch(N, L, D, device_vmem):
    """Largest divisor of N whose (Bb, L, D) fp32 block fits the budget, keeping
    at least 2 grid steps when N >= 2 (so megacore / v7x's 2 TCs can shard)."""
    max_block_bytes = max(4 << 20, device_vmem // 16)   # ~8 MiB on 128 MiB parts, 4 MiB on v7x
    target_rows = 512
    max_bb = N if N < 2 else N // 2
    best = 1
    for bb in range(1, max_bb + 1):
        if N % bb:
            continue
        if bb * L * D * 4 > max_block_bytes:
            break
        best = bb
        if bb * L >= target_rows:
            break
    return best


def _pick_tile_ff(ff_dim, rows, device_vmem):
    budget = max(2 << 20, device_vmem // 24)            # fp32 ff-slab budget
    candidates = [t for t in (ff_dim, 4096, 2048, 1024, 512, 256, 128)
                  if t <= ff_dim and ff_dim % t == 0]
    for t in candidates:
        if rows * t * 8 <= budget:
            return t
    return candidates[-1] if candidates else ff_dim


def _vmem_limit_bytes(Bb, L, D, tile_ff, device_vmem):
    rows = Bb * L
    weights = 12 * D * D * 2                            # bf16, single-buffered (VMEM space)
    small = (L * L + 20 * D) * 4                        # mask + biases + LN params
    io = 2 * 2 * rows * D * 4                           # x / out blocks, double-buffered
    interm = (rows * D * 4 * 12                         # residual / LN / attn temporaries
              + rows * 3 * D * 6                        # qkv f32 + bf16 copy
              + 3 * Bb * L * L * 4                      # per-head score temporaries
              + 2 * rows * tile_ff * 4)                 # ff slab
    est = weights + small + io + interm
    cap = int(device_vmem * 0.8)                        # never exceed physical VMEM (v7x!)
    return max(16 * 1024 * 1024, min(cap, int(est * 3) // 2))


def _pad_len(L):
    """Lane-dense padding: multiple of 128 when overhead is modest, else multiple of 8."""
    if L % 128 == 0:
        return L
    p128 = _round_up(L, 128)
    if p128 <= 2 * L:
        return p128
    return _round_up(L, 8)


# ----------------------------------------------------------------------------- wrapper
def _resblock(x_nld, p, attn_mask, n_head):
    N, L, D = x_nld.shape
    device_vmem = _device_vmem_bytes()
    Bb = _pick_block_batch(N, L, D, device_vmem)
    tile_ff = _pick_tile_ff(p["wfc"].shape[1], Bb * L, device_vmem)
    kernel = functools.partial(_resblock_kernel, n_head, tile_ff)

    side_inputs = (attn_mask,
                   p["ln1_w"], p["ln1_b"],
                   p["wqkv"], p["bqkv"], p["wo"], p["bo"],
                   p["ln2_w"], p["ln2_b"],
                   p["wfc"], p["bfc"], p["wproj"], p["bproj"])
    in_specs = [pl.BlockSpec((Bb, L, D), lambda b: (b, 0, 0))]
    # Constant-index side inputs: whole-array VMEM residency, single-buffered
    # (index never changes across the grid, so no double-buffer is needed).
    in_specs += [pl.BlockSpec(memory_space=pltpu.MemorySpace.VMEM)
                 for _ in side_inputs]

    return pl.pallas_call(
        kernel,
        out_shape=jax.ShapeDtypeStruct((N, L, D), x_nld.dtype),
        grid_spec=pltpu.PrefetchScalarGridSpec(
            num_scalar_prefetch=0,
            grid=(N // Bb,),
            in_specs=in_specs,
            out_specs=pl.BlockSpec((Bb, L, D), lambda b: (b, 0, 0)),
        ),
        compiler_params=pltpu.CompilerParams(
            dimension_semantics=("parallel",),
            vmem_limit_bytes=_vmem_limit_bytes(Bb, L, D, tile_ff, device_vmem),
        ),
    )(x_nld, *side_inputs)


def transformer_forward(x_lnd, params, attn_mask, n_head):
    """x_lnd: (L, N, D) as in CLIP's Transformer.forward.  `params` must be the
    output of prepare_params (bf16 weights, q-scale pre-folded)."""
    L, N, D = x_lnd.shape
    if attn_mask is None:
        attn_mask = jnp.zeros((L, L), jnp.float32)
    attn_mask = attn_mask.astype(jnp.float32)

    L_pad = _pad_len(L)
    x = jnp.transpose(x_lnd, (1, 0, 2))                   # (N, L, D)
    if L_pad != L:
        x = jnp.pad(x, ((0, 0), (0, L_pad - L), (0, 0)))
        m = jnp.full((L_pad, L_pad), -jnp.inf, jnp.float32)
        m = m.at[:, :L].set(0.0)                           # padded queries see real keys
        m = m.at[:L, :L].set(attn_mask)                    # real queries: original mask
        attn_mask = m                                      # padded keys stay -inf

    for p in params:
        x = _resblock(x, p, attn_mask, n_head)

    if L_pad != L:
        x = x[:, :L, :]
    return jnp.transpose(x, (1, 0, 2))                     # back to (L, N, D)


# ----------------------------------------------------------------------------- params
def init_transformer_params(key, width, layers):
    """Deterministic synthetic init in fp32, torch-semantic.  Weights stored as
    (in, out) = torch_weight.T."""
    D = width
    params = []
    for _ in range(layers):
        key, k0, k1, k2, k3, k4, k5, k6, k7 = jax.random.split(key, 9)
        nrm = lambda k, shape, std: jax.random.normal(k, shape, jnp.float32) * std
        params.append(dict(
            ln1_w=jnp.ones((1, D), jnp.float32),
            ln1_b=jnp.zeros((1, D), jnp.float32),
            wqkv=nrm(k0, (D, 3 * D), D ** -0.5),
            bqkv=nrm(k4, (1, 3 * D), 0.02),
            wo=nrm(k1, (D, D), D ** -0.5),
            bo=nrm(k5, (1, D), 0.02),
            ln2_w=jnp.ones((1, D), jnp.float32),
            ln2_b=jnp.zeros((1, D), jnp.float32),
            wfc=nrm(k2, (D, 4 * D), D ** -0.5),
            bfc=nrm(k6, (1, 4 * D), 0.02),
            wproj=nrm(k3, (4 * D, D), (4 * D) ** -0.5),
            bproj=nrm(k7, (1, D), 0.02),
        ))
    return params


def prepare_params(params, n_head):
    """Fold 1/sqrt(head_dim) into the q columns of wqkv/bqkv and cast matmul
    weights to bf16 (MXU native).  Biases / LN params stay fp32."""
    out = []
    for p in params:
        D = p["wqkv"].shape[0]
        scale = (D // n_head) ** -0.5
        wqkv = p["wqkv"].at[:, :D].multiply(scale)
        bqkv = p["bqkv"].at[:, :D].multiply(scale)
        out.append(dict(
            ln1_w=p["ln1_w"], ln1_b=p["ln1_b"],
            wqkv=wqkv.astype(jnp.bfloat16), bqkv=bqkv,
            wo=p["wo"].astype(jnp.bfloat16), bo=p["bo"],
            ln2_w=p["ln2_w"], ln2_b=p["ln2_b"],
            wfc=p["wfc"].astype(jnp.bfloat16), bfc=p["bfc"],
            wproj=p["wproj"].astype(jnp.bfloat16), bproj=p["bproj"],
        ))
    return out


# ---- pure-JAX reference mirroring the kernel's bf16-matmul / fp32-accum policy ----
def _ref_forward(x_lnd, params, attn_mask, n_head):
    f32, bf16 = jnp.float32, jnp.bfloat16
    L, N, D = x_lnd.shape
    H, hd = n_head, D // n_head
    x = jnp.transpose(x_lnd, (1, 0, 2)).astype(f32)

    def ln(v, w, b, eps=1e-5):
        mu = v.mean(-1, keepdims=True)
        var = ((v - mu) ** 2).mean(-1, keepdims=True)
        return (v - mu) / jnp.sqrt(var + eps) * w + b

    def mm(a, w):
        return jnp.dot(a.astype(bf16), w.astype(bf16), preferred_element_type=f32)

    for p in params:
        h = ln(x, p["ln1_w"], p["ln1_b"])
        qkv = mm(h, p["wqkv"]) + p["bqkv"]
        q, k, v = jnp.split(qkv, 3, axis=-1)
        q = (q * hd ** -0.5).astype(bf16).reshape(N, L, H, hd)
        k = k.astype(bf16).reshape(N, L, H, hd)
        v = v.astype(bf16).reshape(N, L, H, hd)
        s = jnp.einsum('nqhd,nkhd->nhqk', q, k, preferred_element_type=f32) + attn_mask
        a = jax.nn.softmax(s, axis=-1)
        o = jnp.einsum('nhqk,nkhd->nqhd', a.astype(bf16), v,
                       preferred_element_type=f32).reshape(N, L, D)
        x = x + mm(o, p["wo"]) + p["bo"]
        h2 = ln(x, p["ln2_w"], p["ln2_b"])
        ff = mm(h2, p["wfc"]) + p["bfc"]
        ff = ff * jax.nn.sigmoid(1.702 * ff)
        x = x + mm(ff, p["wproj"]) + p["bproj"]
    return jnp.transpose(x, (1, 0, 2))


if __name__ == "__main__":
    # Small shapes: L=12 exercises the seq-padding path (pads to 16), N=2 keeps
    # the batch grid at >= 2 steps, D=32 with 4 heads (head_dim=8).
    L, N, D, HEADS, LAYERS = 12, 2, 32, 4, 2
    key = jax.random.PRNGKey(0)
    kx, kp = jax.random.split(key)

    x = jax.random.normal(kx, (L, N, D), jnp.float32)       # (seq, batch, width)
    raw_params = init_transformer_params(kp, D, LAYERS)
    kernel_params = prepare_params(raw_params, HEADS)
    # Causal additive mask as built by CLIP's build_attention_mask().
    attn_mask = jnp.triu(jnp.full((L, L), float("-inf"), jnp.float32), k=1)

    fwd = jax.jit(transformer_forward, static_argnums=(3,))
    out = jax.block_until_ready(fwd(x, kernel_params, attn_mask, HEADS))

    ref = _ref_forward(x, raw_params, attn_mask, HEADS)
    assert out.shape == (L, N, D)
    # Tolerance covers bf16 MXU rounding, the pre-folded q-scale, and the
    # approx softmax reciprocal (deliberate precision trade).
    err = float(jnp.max(jnp.abs(out - ref)))
    assert err < 3e-2, f"mismatch vs reference: {err}"
    print("KERNEL_OK")
</pallas_src>

<mosaic_0001>
module attributes {stable_mosaic.version = 11 : i64} {
  func.func @_resblock_kernel(%arg0: i32, %arg1: memref<1x16x32xf32, #tpu.memory_space<vmem>>, %arg2: memref<16x16xf32, #tpu.memory_space<vmem>>, %arg3: memref<1x32xf32, #tpu.memory_space<vmem>>, %arg4: memref<1x32xf32, #tpu.memory_space<vmem>>, %arg5: memref<32x96xbf16, #tpu.memory_space<vmem>>, %arg6: memref<1x96xf32, #tpu.memory_space<vmem>>, %arg7: memref<32x32xbf16, #tpu.memory_space<vmem>>, %arg8: memref<1x32xf32, #tpu.memory_space<vmem>>, %arg9: memref<1x32xf32, #tpu.memory_space<vmem>>, %arg10: memref<1x32xf32, #tpu.memory_space<vmem>>, %arg11: memref<32x128xbf16, #tpu.memory_space<vmem>>, %arg12: memref<1x128xf32, #tpu.memory_space<vmem>>, %arg13: memref<128x32xbf16, #tpu.memory_space<vmem>>, %arg14: memref<1x32xf32, #tpu.memory_space<vmem>>, %arg15: memref<1x16x32xf32, #tpu.memory_space<vmem>>) attributes {dimension_semantics = [#tpu.dimension_semantics<parallel>], iteration_bounds = array<i64: 2>, scalar_prefetch = 0 : i64, scratch_operands = 0 : i64, tpu.core_type = #tpu.core_type<tc>, window_params = [{transform_indices = @transform_0, window_bounds = array<i64: 1, 16, 32>}, {pipeline_mode = #tpu.pipeline_mode<synchronous>, transform_indices = @transform_1, window_bounds = array<i64: 16, 16>}, {pipeline_mode = #tpu.pipeline_mode<synchronous>, transform_indices = @transform_2, window_bounds = array<i64: 1, 32>}, {pipeline_mode = #tpu.pipeline_mode<synchronous>, transform_indices = @transform_3, window_bounds = array<i64: 1, 32>}, {pipeline_mode = #tpu.pipeline_mode<synchronous>, transform_indices = @transform_4, window_bounds = array<i64: 32, 96>}, {pipeline_mode = #tpu.pipeline_mode<synchronous>, transform_indices = @transform_5, window_bounds = array<i64: 1, 96>}, {pipeline_mode = #tpu.pipeline_mode<synchronous>, transform_indices = @transform_6, window_bounds = array<i64: 32, 32>}, {pipeline_mode = #tpu.pipeline_mode<synchronous>, transform_indices = @transform_7, window_bounds = array<i64: 1, 32>}, {pipeline_mode = #tpu.pipeline_mode<synchronous>, transform_indices = @transform_8, window_bounds = array<i64: 1, 32>}, {pipeline_mode = #tpu.pipeline_mode<synchronous>, transform_indices = @transform_9, window_bounds = array<i64: 1, 32>}, {pipeline_mode = #tpu.pipeline_mode<synchronous>, transform_indices = @transform_10, window_bounds = array<i64: 32, 128>}, {pipeline_mode = #tpu.pipeline_mode<synchronous>, transform_indices = @transform_11, window_bounds = array<i64: 1, 128>}, {pipeline_mode = #tpu.pipeline_mode<synchronous>, transform_indices = @transform_12, window_bounds = array<i64: 128, 32>}, {pipeline_mode = #tpu.pipeline_mode<synchronous>, transform_indices = @transform_13, window_bounds = array<i64: 1, 32>}, {transform_indices = @transform_14, window_bounds = array<i64: 1, 16, 32>}]} {
    %c0 = arith.constant 0 : index
    %c0_0 = arith.constant 0 : index
    %c0_1 = arith.constant 0 : index
    %0 = vector.load %arg1[%c0, %c0_0, %c0_1] : memref<1x16x32xf32, #tpu.memory_space<vmem>>, vector<1x16x32xf32>
    %1 = vector.shape_cast %0 : vector<1x16x32xf32> to vector<16x32xf32>
    %c0_2 = arith.constant 0 : index
    %c0_3 = arith.constant 0 : index
    %2 = vector.load %arg3[%c0_2, %c0_3] : memref<1x32xf32, #tpu.memory_space<vmem>>, vector<1x32xf32>
    %c0_4 = arith.constant 0 : index
    %c0_5 = arith.constant 0 : index
    %3 = vector.load %arg4[%c0_4, %c0_5] : memref<1x32xf32, #tpu.memory_space<vmem>>, vector<1x32xf32>
    %cst = arith.constant dense<0.000000e+00> : vector<16xf32>
    %4 = vector.multi_reduction <add>, %1, %cst [1] : vector<16x32xf32> to vector<16xf32>
    %5 = vector.shape_cast %4 : vector<16xf32> to vector<16x1xf32>
    %cst_6 = arith.constant 3.200000e+01 : f32
    %6 = vector.broadcast %cst_6 : f32 to vector<16x1xf32>
    %7 = arith.divf %5, %6 : vector<16x1xf32>
    %8 = vector.broadcast %7 : vector<16x1xf32> to vector<16x32xf32>
    %9 = arith.subf %1, %8 : vector<16x32xf32>
    %10 = arith.mulf %9, %9 : vector<16x32xf32>
    %cst_7 = arith.constant dense<0.000000e+00> : vector<16xf32>
    %11 = vector.multi_reduction <add>, %10, %cst_7 [1] : vector<16x32xf32> to vector<16xf32>
    %12 = vector.shape_cast %11 : vector<16xf32> to vector<16x1xf32>
    %cst_8 = arith.constant 3.200000e+01 : f32
    %13 = vector.broadcast %cst_8 : f32 to vector<16x1xf32>
    %14 = arith.divf %12, %13 : vector<16x1xf32>
    %15 = vector.broadcast %7 : vector<16x1xf32> to vector<16x32xf32>
    %16 = arith.subf %1, %15 : vector<16x32xf32>
    %cst_9 = arith.constant 9.99999974E-6 : f32
    %17 = vector.broadcast %cst_9 : f32 to vector<16x1xf32>
    %18 = arith.addf %14, %17 : vector<16x1xf32>
    %19 = math.rsqrt %18 : vector<16x1xf32>
    %20 = vector.broadcast %19 : vector<16x1xf32> to vector<16x32xf32>
    %21 = arith.mulf %16, %20 : vector<16x32xf32>
    %22 = vector.broadcast %2 : vector<1x32xf32> to vector<16x32xf32>
    %23 = arith.mulf %21, %22 : vector<16x32xf32>
    %24 = vector.broadcast %3 : vector<1x32xf32> to vector<16x32xf32>
    %25 = arith.addf %23, %24 : vector<16x32xf32>
    %26 = arith.truncf %25 : vector<16x32xf32> to vector<16x32xbf16>
    %c0_10 = arith.constant 0 : index
    %c0_11 = arith.constant 0 : index
    %27 = vector.load %arg5[%c0_10, %c0_11] : memref<32x96xbf16, #tpu.memory_space<vmem>>, vector<32x96xbf16>
    %cst_12 = arith.constant dense<0.000000e+00> : vector<16x96xf32>
    %28 = tpu.matmul %26, %27, %cst_12 {dimension_numbers = #tpu.dot_dimension_numbers<[1], [0], [0], [1], [0, 0, 1, 1], [], []>} : vector<16x32xbf16>, vector<32x96xbf16>, vector<16x96xf32> -> vector<16x96xf32>
    %c0_13 = arith.constant 0 : index
    %c0_14 = arith.constant 0 : index
    %29 = vector.load %arg6[%c0_13, %c0_14] : memref<1x96xf32, #tpu.memory_space<vmem>>, vector<1x96xf32>
    %30 = vector.broadcast %29 : vector<1x96xf32> to vector<16x96xf32>
    %31 = arith.addf %28, %30 : vector<16x96xf32>
    %32 = vector.shape_cast %31 : vector<16x96xf32> to vector<1x16x96xf32>
    %33 = arith.truncf %32 : vector<1x16x96xf32> to vector<1x16x96xbf16>
    %c0_15 = arith.constant 0 : index
    %c0_16 = arith.constant 0 : index
    %34 = vector.load %arg2[%c0_15, %c0_16] : memref<16x16xf32, #tpu.memory_space<vmem>>, vector<16x16xf32>
    %35 = vector.extract_strided_slice %33 {offsets = [0, 0, 0], sizes = [1, 16, 8], strides = [1, 1, 1]} : vector<1x16x96xbf16> to vector<1x16x8xbf16>
    %36 = vector.extract_strided_slice %33 {offsets = [0, 0, 32], sizes = [1, 16, 8], strides = [1, 1, 1]} : vector<1x16x96xbf16> to vector<1x16x8xbf16>
    %37 = vector.extract_strided_slice %33 {offsets = [0, 0, 64], sizes = [1, 16, 8], strides = [1, 1, 1]} : vector<1x16x96xbf16> to vector<1x16x8xbf16>
    "tpu.trace_start"() <{level = 10 : i32, message = "bqd,bkd->bqk"}> : () -> ()
    %cst_17 = arith.constant dense<0.000000e+00> : vector<1x16x16xf32>
    %38 = tpu.matmul %35, %36, %cst_17 {dimension_numbers = #tpu.dot_dimension_numbers<[2], [2], [1], [1], [0, 0, 0, 1, 1, 1], [0], [0]>} : vector<1x16x8xbf16>, vector<1x16x8xbf16>, vector<1x16x16xf32> -> vector<1x16x16xf32>
    "tpu.trace_stop"() : () -> ()
    %39 = vector.shape_cast %34 : vector<16x16xf32> to vector<1x16x16xf32>
    %40 = arith.addf %38, %39 : vector<1x16x16xf32>
    %cst_18 = arith.constant dense<0xFF800000> : vector<1x16xf32>
    %41 = vector.multi_reduction <maximumf>, %40, %cst_18 [2] : vector<1x16x16xf32> to vector<1x16xf32>
    %42 = vector.shape_cast %41 : vector<1x16xf32> to vector<1x16x1xf32>
    %43 = vector.broadcast %42 : vector<1x16x1xf32> to vector<1x16x16xf32>
    %44 = arith.subf %40, %43 : vector<1x16x16xf32>
    %45 = math.exp %44 : vector<1x16x16xf32>
    %cst_19 = arith.constant dense<0.000000e+00> : vector<1x16xf32>
    %46 = vector.multi_reduction <add>, %45, %cst_19 [2] : vector<1x16x16xf32> to vector<1x16xf32>
    %47 = vector.shape_cast %46 : vector<1x16xf32> to vector<1x16x1xf32>
    %48 = tpu.reciprocal %47 {approx = true} : vector<1x16x1xf32> -> vector<1x16x1xf32>
    %49 = vector.broadcast %48 : vector<1x16x1xf32> to vector<1x16x16xf32>
    %50 = arith.mulf %45, %49 : vector<1x16x16xf32>
    %51 = arith.truncf %50 : vector<1x16x16xf32> to vector<1x16x16xbf16>
    "tpu.trace_start"() <{level = 10 : i32, message = "bqk,bkd->bqd"}> : () -> ()
    %cst_20 = arith.constant dense<0.000000e+00> : vector<1x16x8xf32>
    %52 = tpu.matmul %51, %37, %cst_20 {dimension_numbers = #tpu.dot_dimension_numbers<[2], [1], [1], [2], [0, 0, 0, 1, 1, 2], [0], [0]>} : vector<1x16x16xbf16>, vector<1x16x8xbf16>, vector<1x16x8xf32> -> vector<1x16x8xf32>
    "tpu.trace_stop"() : () -> ()
    %53 = vector.extract_strided_slice %33 {offsets = [0, 0, 8], sizes = [1, 16, 8], strides = [1, 1, 1]} : vector<1x16x96xbf16> to vector<1x16x8xbf16>
    %54 = vector.extract_strided_slice %33 {offsets = [0, 0, 40], sizes = [1, 16, 8], strides = [1, 1, 1]} : vector<1x16x96xbf16> to vector<1x16x8xbf16>
    %55 = vector.extract_strided_slice %33 {offsets = [0, 0, 72], sizes = [1, 16, 8], strides = [1, 1, 1]} : vector<1x16x96xbf16> to vector<1x16x8xbf16>
    "tpu.trace_start"() <{level = 10 : i32, message = "bqd,bkd->bqk"}> : () -> ()
    %cst_21 = arith.constant dense<0.000000e+00> : vector<1x16x16xf32>
    %56 = tpu.matmul %53, %54, %cst_21 {dimension_numbers = #tpu.dot_dimension_numbers<[2], [2], [1], [1], [0, 0, 0, 1, 1, 1], [0], [0]>} : vector<1x16x8xbf16>, vector<1x16x8xbf16>, vector<1x16x16xf32> -> vector<1x16x16xf32>
    "tpu.trace_stop"() : () -> ()
    %57 = vector.shape_cast %34 : vector<16x16xf32> to vector<1x16x16xf32>
    %58 = arith.addf %56, %57 : vector<1x16x16xf32>
    %cst_22 = arith.constant dense<0xFF800000> : vector<1x16xf32>
    %59 = vector.multi_reduction <maximumf>, %58, %cst_22 [2] : vector<1x16x16xf32> to vector<1x16xf32>
    %60 = vector.shape_cast %59 : vector<1x16xf32> to vector<1x16x1xf32>
    %61 = vector.broadcast %60 : vector<1x16x1xf32> to vector<1x16x16xf32>
    %62 = arith.subf %58, %61 : vector<1x16x16xf32>
    %63 = math.exp %62 : vector<1x16x16xf32>
    %cst_23 = arith.constant dense<0.000000e+00> : vector<1x16xf32>
    %64 = vector.multi_reduction <add>, %63, %cst_23 [2] : vector<1x16x16xf32> to vector<1x16xf32>
    %65 = vector.shape_cast %64 : vector<1x16xf32> to vector<1x16x1xf32>
    %66 = tpu.reciprocal %65 {approx = true} : vector<1x16x1xf32> -> vector<1x16x1xf32>
    %67 = vector.broadcast %66 : vector<1x16x1xf32> to vector<1x16x16xf32>
    %68 = arith.mulf %63, %67 : vector<1x16x16xf32>
    %69 = arith.truncf %68 : vector<1x16x16xf32> to vector<1x16x16xbf16>
    "tpu.trace_start"() <{level = 10 : i32, message = "bqk,bkd->bqd"}> : () -> ()
    %cst_24 = arith.constant dense<0.000000e+00> : vector<1x16x8xf32>
    %70 = tpu.matmul %69, %55, %cst_24 {dimension_numbers = #tpu.dot_dimension_numbers<[2], [1], [1], [2], [0, 0, 0, 1, 1, 2], [0], [0]>} : vector<1x16x16xbf16>, vector<1x16x8xbf16>, vector<1x16x8xf32> -> vector<1x16x8xf32>
    "tpu.trace_stop"() : () -> ()
    %71 = vector.extract_strided_slice %33 {offsets = [0, 0, 16], sizes = [1, 16, 8], strides = [1, 1, 1]} : vector<1x16x96xbf16> to vector<1x16x8xbf16>
    %72 = vector.extract_strided_slice %33 {offsets = [0, 0, 48], sizes = [1, 16, 8], strides = [1, 1, 1]} : vector<1x16x96xbf16> to vector<1x16x8xbf16>
    %73 = vector.extract_strided_slice %33 {offsets = [0, 0, 80], sizes = [1, 16, 8], strides = [1, 1, 1]} : vector<1x16x96xbf16> to vector<1x16x8xbf16>
    "tpu.trace_start"() <{level = 10 : i32, message = "bqd,bkd->bqk"}> : () -> ()
    %cst_25 = arith.constant dense<0.000000e+00> : vector<1x16x16xf32>
    %74 = tpu.matmul %71, %72, %cst_25 {dimension_numbers = #tpu.dot_dimension_numbers<[2], [2], [1], [1], [0, 0, 0, 1, 1, 1], [0], [0]>} : vector<1x16x8xbf16>, vector<1x16x8xbf16>, vector<1x16x16xf32> -> vector<1x16x16xf32>
    "tpu.trace_stop"() : () -> ()
    %75 = vector.shape_cast %34 : vector<16x16xf32> to vector<1x16x16xf32>
    %76 = arith.addf %74, %75 : vector<1x16x16xf32>
    %cst_26 = arith.constant dense<0xFF800000> : vector<1x16xf32>
    %77 = vector.multi_reduction <maximumf>, %76, %cst_26 [2] : vector<1x16x16xf32> to vector<1x16xf32>
    %78 = vector.shape_cast %77 : vector<1x16xf32> to vector<1x16x1xf32>
    %79 = vector.broadcast %78 : vector<1x16x1xf32> to vector<1x16x16xf32>
    %80 = arith.subf %76, %79 : vector<1x16x16xf32>
    %81 = math.exp %80 : vector<1x16x16xf32>
    %cst_27 = arith.constant dense<0.000000e+00> : vector<1x16xf32>
    %82 = vector.multi_reduction <add>, %81, %cst_27 [2] : vector<1x16x16xf32> to vector<1x16xf32>
    %83 = vector.shape_cast %82 : vector<1x16xf32> to vector<1x16x1xf32>
    %84 = tpu.reciprocal %83 {approx = true} : vector<1x16x1xf32> -> vector<1x16x1xf32>
    %85 = vector.broadcast %84 : vector<1x16x1xf32> to vector<1x16x16xf32>
    %86 = arith.mulf %81, %85 : vector<1x16x16xf32>
    %87 = arith.truncf %86 : vector<1x16x16xf32> to vector<1x16x16xbf16>
    "tpu.trace_start"() <{level = 10 : i32, message = "bqk,bkd->bqd"}> : () -> ()
    %cst_28 = arith.constant dense<0.000000e+00> : vector<1x16x8xf32>
    %88 = tpu.matmul %87, %73, %cst_28 {dimension_numbers = #tpu.dot_dimension_numbers<[2], [1], [1], [2], [0, 0, 0, 1, 1, 2], [0], [0]>} : vector<1x16x16xbf16>, vector<1x16x8xbf16>, vector<1x16x8xf32> -> vector<1x16x8xf32>
    "tpu.trace_stop"() : () -> ()
    %89 = vector.extract_strided_slice %33 {offsets = [0, 0, 24], sizes = [1, 16, 8], strides = [1, 1, 1]} : vector<1x16x96xbf16> to vector<1x16x8xbf16>
    %90 = vector.extract_strided_slice %33 {offsets = [0, 0, 56], sizes = [1, 16, 8], strides = [1, 1, 1]} : vector<1x16x96xbf16> to vector<1x16x8xbf16>
    %91 = vector.extract_strided_slice %33 {offsets = [0, 0, 88], sizes = [1, 16, 8], strides = [1, 1, 1]} : vector<1x16x96xbf16> to vector<1x16x8xbf16>
    "tpu.trace_start"() <{level = 10 : i32, message = "bqd,bkd->bqk"}> : () -> ()
    %cst_29 = arith.constant dense<0.000000e+00> : vector<1x16x16xf32>
    %92 = tpu.matmul %89, %90, %cst_29 {dimension_numbers = #tpu.dot_dimension_numbers<[2], [2], [1], [1], [0, 0, 0, 1, 1, 1], [0], [0]>} : vector<1x16x8xbf16>, vector<1x16x8xbf16>, vector<1x16x16xf32> -> vector<1x16x16xf32>
    "tpu.trace_stop"() : () -> ()
    %93 = vector.shape_cast %34 : vector<16x16xf32> to vector<1x16x16xf32>
    %94 = arith.addf %92, %93 : vector<1x16x16xf32>
    %cst_30 = arith.constant dense<0xFF800000> : vector<1x16xf32>
    %95 = vector.multi_reduction <maximumf>, %94, %cst_30 [2] : vector<1x16x16xf32> to vector<1x16xf32>
    %96 = vector.shape_cast %95 : vector<1x16xf32> to vector<1x16x1xf32>
    %97 = vector.broadcast %96 : vector<1x16x1xf32> to vector<1x16x16xf32>
    %98 = arith.subf %94, %97 : vector<1x16x16xf32>
    %99 = math.exp %98 : vector<1x16x16xf32>
    %cst_31 = arith.constant dense<0.000000e+00> : vector<1x16xf32>
    %100 = vector.multi_reduction <add>, %99, %cst_31 [2] : vector<1x16x16xf32> to vector<1x16xf32>
    %101 = vector.shape_cast %100 : vector<1x16xf32> to vector<1x16x1xf32>
    %102 = tpu.reciprocal %101 {approx = true} : vector<1x16x1xf32> -> vector<1x16x1xf32>
    %103 = vector.broadcast %102 : vector<1x16x1xf32> to vector<1x16x16xf32>
    %104 = arith.mulf %99, %103 : vector<1x16x16xf32>
    %105 = arith.truncf %104 : vector<1x16x16xf32> to vector<1x16x16xbf16>
    "tpu.trace_start"() <{level = 10 : i32, message = "bqk,bkd->bqd"}> : () -> ()
    %cst_32 = arith.constant dense<0.000000e+00> : vector<1x16x8xf32>
    %106 = tpu.matmul %105, %91, %cst_32 {dimension_numbers = #tpu.dot_dimension_numbers<[2], [1], [1], [2], [0, 0, 0, 1, 1, 2], [0], [0]>} : vector<1x16x16xbf16>, vector<1x16x8xbf16>, vector<1x16x8xf32> -> vector<1x16x8xf32>
    "tpu.trace_stop"() : () -> ()
    %107 = tpu.concatenate %52, %70, %88, %106 in 2 : vector<1x16x8xf32>, vector<1x16x8xf32>, vector<1x16x8xf32>, vector<1x16x8xf32> -> vector<1x16x32xf32>
    %108 = vector.shape_cast %107 : vector<1x16x32xf32> to vector<16x32xf32>
    %109 = arith.truncf %108 : vector<16x32xf32> to vector<16x32xbf16>
    %c0_33 = arith.constant 0 : index
    %c0_34 = arith.constant 0 : index
    %110 = vector.load %arg7[%c0_33, %c0_34] : memref<32x32xbf16, #tpu.memory_space<vmem>>, vector<32x32xbf16>
    %cst_35 = arith.constant dense<0.000000e+00> : vector<16x32xf32>
    %111 = tpu.matmul %109, %110, %cst_35 {dimension_numbers = #tpu.dot_dimension_numbers<[1], [0], [0], [1], [0, 0, 1, 1], [], []>} : vector<16x32xbf16>, vector<32x32xbf16>, vector<16x32xf32> -> vector<16x32xf32>
    %112 = arith.addf %1, %111 : vector<16x32xf32>
    %c0_36 = arith.constant 0 : index
    %c0_37 = arith.constant 0 : index
    %113 = vector.load %arg8[%c0_36, %c0_37] : memref<1x32xf32, #tpu.memory_space<vmem>>, vector<1x32xf32>
    %114 = vector.broadcast %113 : vector<1x32xf32> to vector<16x32xf32>
    %115 = arith.addf %112, %114 : vector<16x32xf32>
    %c0_38 = arith.constant 0 : index
    %c0_39 = arith.constant 0 : index
    %116 = vector.load %arg9[%c0_38, %c0_39] : memref<1x32xf32, #tpu.memory_space<vmem>>, vector<1x32xf32>
    %c0_40 = arith.constant 0 : index
    %c0_41 = arith.constant 0 : index
    %117 = vector.load %arg10[%c0_40, %c0_41] : memref<1x32xf32, #tpu.memory_space<vmem>>, vector<1x32xf32>
    %cst_42 = arith.constant dense<0.000000e+00> : vector<16xf32>
    %118 = vector.multi_reduction <add>, %115, %cst_42 [1] : vector<16x32xf32> to vector<16xf32>
    %119 = vector.shape_cast %118 : vector<16xf32> to vector<16x1xf32>
    %cst_43 = arith.constant 3.200000e+01 : f32
    %120 = vector.broadcast %cst_43 : f32 to vector<16x1xf32>
    %121 = arith.divf %119, %120 : vector<16x1xf32>
    %122 = vector.broadcast %121 : vector<16x1xf32> to vector<16x32xf32>
    %123 = arith.subf %115, %122 : vector<16x32xf32>
    %124 = arith.mulf %123, %123 : vector<16x32xf32>
    %cst_44 = arith.constant dense<0.000000e+00> : vector<16xf32>
    %125 = vector.multi_reduction <add>, %124, %cst_44 [1] : vector<16x32xf32> to vector<16xf32>
    %126 = vector.shape_cast %125 : vector<16xf32> to vector<16x1xf32>
    %cst_45 = arith.constant 3.200000e+01 : f32
    %127 = vector.broadcast %cst_45 : f32 to vector<16x1xf32>
    %128 = arith.divf %126, %127 : vector<16x1xf32>
    %129 = vector.broadcast %121 : vector<16x1xf32> to vector<16x32xf32>
    %130 = arith.subf %115, %129 : vector<16x32xf32>
    %cst_46 = arith.constant 9.99999974E-6 : f32
    %131 = vector.broadcast %cst_46 : f32 to vector<16x1xf32>
    %132 = arith.addf %128, %131 : vector<16x1xf32>
    %133 = math.rsqrt %132 : vector<16x1xf32>
    %134 = vector.broadcast %133 : vector<16x1xf32> to vector<16x32xf32>
    %135 = arith.mulf %130, %134 : vector<16x32xf32>
    %136 = vector.broadcast %116 : vector<1x32xf32> to vector<16x32xf32>
    %137 = arith.mulf %135, %136 : vector<16x32xf32>
    %138 = vector.broadcast %117 : vector<1x32xf32> to vector<16x32xf32>
    %139 = arith.addf %137, %138 : vector<16x32xf32>
    %140 = arith.truncf %139 : vector<16x32xf32> to vector<16x32xbf16>
    %cst_47 = arith.constant 0.000000e+00 : f32
    %141 = vector.broadcast %cst_47 : f32 to vector<16x32xf32>
    %c0_48 = arith.constant 0 : index
    %c0_49 = arith.constant 0 : index
    %142 = vector.load %arg11[%c0_48, %c0_49] : memref<32x128xbf16, #tpu.memory_space<vmem>>, vector<32x128xbf16>
    %cst_50 = arith.constant dense<0.000000e+00> : vector<16x128xf32>
    %143 = tpu.matmul %140, %142, %cst_50 {dimension_numbers = #tpu.dot_dimension_numbers<[1], [0], [0], [1], [0, 0, 1, 1], [], []>} : vector<16x32xbf16>, vector<32x128xbf16>, vector<16x128xf32> -> vector<16x128xf32>
    %c0_51 = arith.constant 0 : index
    %c0_52 = arith.constant 0 : index
    %144 = vector.load %arg12[%c0_51, %c0_52] : memref<1x128xf32, #tpu.memory_space<vmem>>, vector<1x128xf32>
    %145 = vector.broadcast %144 : vector<1x128xf32> to vector<16x128xf32>
    %146 = arith.addf %143, %145 : vector<16x128xf32>
    %cst_53 = arith.constant 1.702000e+00 : f32
    %147 = vector.broadcast %cst_53 : f32 to vector<16x128xf32>
    %148 = arith.mulf %147, %146 : vector<16x128xf32>
    %149 = arith.negf %148 : vector<16x128xf32>
    %150 = math.exp %149 : vector<16x128xf32>
    %cst_54 = arith.constant 1.000000e+00 : f32
    %151 = vector.broadcast %cst_54 : f32 to vector<16x128xf32>
    %152 = arith.addf %151, %150 : vector<16x128xf32>
    %153 = arith.divf %151, %152 : vector<16x128xf32>
    %154 = arith.mulf %146, %153 : vector<16x128xf32>
    %155 = arith.truncf %154 : vector<16x128xf32> to vector<16x128xbf16>
    %c0_55 = arith.constant 0 : index
    %c0_56 = arith.constant 0 : index
    %156 = vector.load %arg13[%c0_55, %c0_56] : memref<128x32xbf16, #tpu.memory_space<vmem>>, vector<128x32xbf16>
    %cst_57 = arith.constant dense<0.000000e+00> : vector<16x32xf32>
    %157 = tpu.matmul %155, %156, %cst_57 {dimension_numbers = #tpu.dot_dimension_numbers<[1], [0], [0], [1], [0, 0, 1, 1], [], []>} : vector<16x128xbf16>, vector<128x32xbf16>, vector<16x32xf32> -> vector<16x32xf32>
    %158 = arith.addf %141, %157 : vector<16x32xf32>
    %159 = arith.addf %115, %158 : vector<16x32xf32>
    %c0_58 = arith.constant 0 : index
    %c0_59 = arith.constant 0 : index
    %160 = vector.load %arg14[%c0_58, %c0_59] : memref<1x32xf32, #tpu.memory_space<vmem>>, vector<1x32xf32>
    %161 = vector.broadcast %160 : vector<1x32xf32> to vector<16x32xf32>
    %162 = arith.addf %159, %161 : vector<16x32xf32>
    %163 = vector.shape_cast %162 : vector<16x32xf32> to vector<1x16x32xf32>
    %c0_60 = arith.constant 0 : index
    %c0_61 = arith.constant 0 : index
    %c0_62 = arith.constant 0 : index
    %164 = vector.load %arg15[%c0_60, %c0_61, %c0_62] : memref<1x16x32xf32, #tpu.memory_space<vmem>>, vector<1x16x32xf32>
    tpu.vector_store %arg15[%c0_60, %c0_61, %c0_62], %163 {strides = array<i32>} : memref<1x16x32xf32, #tpu.memory_space<vmem>>, vector<1x16x32xf32>,
    return
  }
  func.func @transform_0(%arg0: i32) -> (i32, i32, i32) {
    %c0_i32 = arith.constant 0 : i32
    %c0_i32_0 = arith.constant 0 : i32
    %c0_i32_1 = arith.constant 0 : i32
    return %arg0, %c0_i32, %c0_i32_0 : i32, i32, i32
  }
  func.func @transform_1(%arg0: i32) -> (i32, i32) {
    %c0_i32 = arith.constant 0 : i32
    %c0_i32_0 = arith.constant 0 : i32
    %c0_i32_1 = arith.constant 0 : i32
    return %c0_i32, %c0_i32_0 : i32, i32
  }
  func.func @transform_2(%arg0: i32) -> (i32, i32) {
    %c0_i32 = arith.constant 0 : i32
    %c0_i32_0 = arith.constant 0 : i32
    %c0_i32_1 = arith.constant 0 : i32
    return %c0_i32, %c0_i32_0 : i32, i32
  }
  func.func @transform_3(%arg0: i32) -> (i32, i32) {
    %c0_i32 = arith.constant 0 : i32
    %c0_i32_0 = arith.constant 0 : i32
    %c0_i32_1 = arith.constant 0 : i32
    return %c0_i32, %c0_i32_0 : i32, i32
  }
  func.func @transform_4(%arg0: i32) -> (i32, i32) {
    %c0_i32 = arith.constant 0 : i32
    %c0_i32_0 = arith.constant 0 : i32
    %c0_i32_1 = arith.constant 0 : i32
    return %c0_i32, %c0_i32_0 : i32, i32
  }
  func.func @transform_5(%arg0: i32) -> (i32, i32) {
    %c0_i32 = arith.constant 0 : i32
    %c0_i32_0 = arith.constant 0 : i32
    %c0_i32_1 = arith.constant 0 : i32
    return %c0_i32, %c0_i32_0 : i32, i32
  }
  func.func @transform_6(%arg0: i32) -> (i32, i32) {
    %c0_i32 = arith.constant 0 : i32
    %c0_i32_0 = arith.constant 0 : i32
    %c0_i32_1 = arith.constant 0 : i32
    return %c0_i32, %c0_i32_0 : i32, i32
  }
  func.func @transform_7(%arg0: i32) -> (i32, i32) {
    %c0_i32 = arith.constant 0 : i32
    %c0_i32_0 = arith.constant 0 : i32
    %c0_i32_1 = arith.constant 0 : i32
    return %c0_i32, %c0_i32_0 : i32, i32
  }
  func.func @transform_8(%arg0: i32) -> (i32, i32) {
    %c0_i32 = arith.constant 0 : i32
    %c0_i32_0 = arith.constant 0 : i32
    %c0_i32_1 = arith.constant 0 : i32
    return %c0_i32, %c0_i32_0 : i32, i32
  }
  func.func @transform_9(%arg0: i32) -> (i32, i32) {
    %c0_i32 = arith.constant 0 : i32
    %c0_i32_0 = arith.constant 0 : i32
    %c0_i32_1 = arith.constant 0 : i32
    return %c0_i32, %c0_i32_0 : i32, i32
  }
  func.func @transform_10(%arg0: i32) -> (i32, i32) {
    %c0_i32 = arith.constant 0 : i32
    %c0_i32_0 = arith.constant 0 : i32
    %c0_i32_1 = arith.constant 0 : i32
    return %c0_i32, %c0_i32_0 : i32, i32
  }
  func.func @transform_11(%arg0: i32) -> (i32, i32) {
    %c0_i32 = arith.constant 0 : i32
    %c0_i32_0 = arith.constant 0 : i32
    %c0_i32_1 = arith.constant 0 : i32
    return %c0_i32, %c0_i32_0 : i32, i32
  }
  func.func @transform_12(%arg0: i32) -> (i32, i32) {
    %c0_i32 = arith.constant 0 : i32
    %c0_i32_0 = arith.constant 0 : i32
    %c0_i32_1 = arith.constant 0 : i32
    return %c0_i32, %c0_i32_0 : i32, i32
  }
  func.func @transform_13(%arg0: i32) -> (i32, i32) {
    %c0_i32 = arith.constant 0 : i32
    %c0_i32_0 = arith.constant 0 : i32
    %c0_i32_1 = arith.constant 0 : i32
    return %c0_i32, %c0_i32_0 : i32, i32
  }
  func.func @transform_14(%arg0: i32) -> (i32, i32, i32) {
    %c0_i32 = arith.constant 0 : i32
    %c0_i32_0 = arith.constant 0 : i32
    %c0_i32_1 = arith.constant 0 : i32
    return %arg0, %c0_i32, %c0_i32_0 : i32, i32, i32
  }
}

</mosaic_0001>

<llo_original>
// kernel: transformer_forward.2
$region0: #{transformer_forward.2}
  #allocation0 [shape = 'u32[]', space=smem, size = 0x4, offset = 0x4, fixed_abs, tag = 'smem constant byte address 0x4 - core index']
  #allocation1 [shape = 'u32[144,128]{1,0:T(1,128)}', space=vmem, size = 0x12000, scoped, tag = 'internal scratch']
  %s0 = inlined_call_operand.vmem [shape: f32[2,16,32], index: 0, kind: input, shape index: {}]
  %s1 = inlined_call_operand.vmem [shape: f32[16,16], index: 1, kind: input, shape index: {}]
  %s2 = inlined_call_operand.vmem [shape: f32[1,32], index: 2, kind: input, shape index: {}]
  %s3 = inlined_call_operand.vmem [shape: f32[1,32], index: 3, kind: input, shape index: {}]
  %s4 = inlined_call_operand.vmem [shape: bf16[32,96], index: 4, kind: input, shape index: {}]
  %s5 = inlined_call_operand.vmem [shape: f32[1,96], index: 5, kind: input, shape index: {}]
  %s6 = inlined_call_operand.vmem [shape: bf16[32,32], index: 6, kind: input, shape index: {}]
  %s7 = inlined_call_operand.vmem [shape: f32[1,32], index: 7, kind: input, shape index: {}]
  %s8 = inlined_call_operand.vmem [shape: f32[1,32], index: 8, kind: input, shape index: {}]
  %s9 = inlined_call_operand.vmem [shape: f32[1,32], index: 9, kind: input, shape index: {}]
  %s10 = inlined_call_operand.vmem [shape: bf16[32,128], index: 10, kind: input, shape index: {}]
  %s11 = inlined_call_operand.vmem [shape: f32[1,128], index: 11, kind: input, shape index: {}]
  %s12 = inlined_call_operand.vmem [shape: bf16[128,32], index: 12, kind: input, shape index: {}]
  %s13 = inlined_call_operand.vmem [shape: f32[1,32], index: 13, kind: input, shape index: {}]
  %s14 = inlined_call_operand.vmem [shape: f32[2,16,32], index: 14, kind: output, shape index: {}]
  %s15 = sld [smem:[#allocation0]]
  $region89: #{transformer_forward.2} parent=0
    _
  %s17 = ssub.s32 1, %s15
  %s18 = scalar_select 0, %s17, %s15
  loop: start=0, step=1, limit=4
  $region2: #{transformer_forward.2} parent=0 // loop_pre_header
    _
  $region3: #{transformer_forward.2} parent=0 // loop_header
    %s20 = sphi 0, %s24
    %p21 = scmp.ge.s32.totalorder %s20, 4
    %s30 = sphi 0, %s32
    %s33 = sphi 0, %s30
    %s34 = sphi 0, %s33
    %s50 = sphi 0, %s34
    %s54 = sphi 0, %s54
    %s56 = sphi 0, %s54
    %s57 = sphi 0, %s56
    %s71 = sphi 0, %s57
    %s75 = sphi 0, %s75
    %s77 = sphi 0, %s75
    %s78 = sphi 0, %s77
    %s92 = sphi 0, %s78
    %s96 = sphi 0, %s96
    %s98 = sphi 0, %s96
    %s99 = sphi 0, %s98
    %s113 = sphi 0, %s99
    %s117 = sphi 0, %s117
    %s119 = sphi 0, %s117
    %s120 = sphi 0, %s119
    %s134 = sphi 0, %s120
    %s138 = sphi 0, %s138
    %s140 = sphi 0, %s138
    %s141 = sphi 0, %s140
    %s155 = sphi 0, %s141
    %s159 = sphi 0, %s159
    %s161 = sphi 0, %s159
    %s162 = sphi 0, %s161
    %s176 = sphi 0, %s162
    %s180 = sphi 0, %s180
    %s182 = sphi 0, %s180
    %s183 = sphi 0, %s182
    %s197 = sphi 0, %s183
    %s201 = sphi 0, %s201
    %s203 = sphi 0, %s201
    %s204 = sphi 0, %s203
    %s218 = sphi 0, %s204
    %s222 = sphi 0, %s222
    %s224 = sphi 0, %s222
    %s225 = sphi 0, %s224
    %s239 = sphi 0, %s225
    %s243 = sphi 0, %s243
    %s245 = sphi 0, %s243
    %s246 = sphi 0, %s245
    %s260 = sphi 0, %s246
    %s264 = sphi 0, %s264
    %s266 = sphi 0, %s264
    %s267 = sphi 0, %s266
    %s281 = sphi 0, %s267
    %s285 = sphi 0, %s285
    %s287 = sphi 0, %s285
    %s288 = sphi 0, %s287
    %s302 = sphi 0, %s288
    %s306 = sphi 0, %s306
    %s308 = sphi 0, %s306
    %s309 = sphi 0, %s308
    %s323 = sphi 0, %s309
    %s329 = sphi 0, %s331
    %s332 = sphi 0, %s329
    %s333 = sphi 0, %s332
    %s349 = sphi 0, %s333
  $region4: #{transformer_forward.2} parent=0 // loop_header_branch
    %23 = sbr.rel (%p21) target = $region8
  $region5: #{transformer_forward.2} parent=0 // loop_body
    %s25 = ssub.s32 %s20, 1
    %s26 = ssub.s32 %s20, 2
    %s27 = sadd.s32 %s20, 1
    %s28 = ssub.s32 %s20, %s27
    %p29 = scmp.eq.s32.totalorder %s28, 0
    %s31 = sadd.s32 %s30, 1
    %s32 = scalar_select %p29, %s30, %s31
    %p35 = pneg %p29
    %p36 = scmp.eq.s32.totalorder %s20, 1
    %p37 = por %p35, %p36
    %p38 = scmp.ne.s32.totalorder %s30, %s33
    %p39 = scmp.eq.s32.totalorder %s20, 0
    %p40 = por %p38, %p39
    %p41 = scmp.ne.s32.totalorder %s30, %s33
    %p42 = scmp.eq.s32.totalorder %s25, 1
    %p43 = por %p41, %p42
    %p44 = scmp.ne.s32.totalorder %s33, %s34
    %p45 = scmp.eq.s32.totalorder %s25, 0
    %p46 = por %p44, %p45
    %p47 = scmp.ne.s32.totalorder %s33, %s34
    %p48 = scmp.eq.s32.totalorder %s26, 1
    %p49 = por %p47, %p48
    %p51 = scmp.ne.s32.totalorder %s34, %s50
    %p52 = scmp.eq.s32.totalorder %s26, 0
    %p53 = por %p51, %p52
    %s55 = sadd.s32 %s54, 1
    %p58 = scmp.eq.s32.totalorder %s20, 1
    %p59 = scmp.ne.s32.totalorder %s54, %s56
    %p60 = scmp.eq.s32.totalorder %s20, 0
    %p61 = por %p59, %p60
    %p62 = scmp.ne.s32.totalorder %s54, %s56
    %p63 = scmp.eq.s32.totalorder %s25, 1
    %p64 = por %p62, %p63
    %p65 = scmp.ne.s32.totalorder %s56, %s57
    %p66 = scmp.eq.s32.totalorder %s25, 0
    %p67 = por %p65, %p66
    %p68 = scmp.ne.s32.totalorder %s56, %s57
    %p69 = scmp.eq.s32.totalorder %s26, 1
    %p70 = por %p68, %p69
    %p72 = scmp.ne.s32.totalorder %s57, %s71
    %p73 = scmp.eq.s32.totalorder %s26, 0
    %p74 = por %p72, %p73
    %s76 = sadd.s32 %s75, 1
    %p79 = scmp.eq.s32.totalorder %s20, 1
    %p80 = scmp.ne.s32.totalorder %s75, %s77
    %p81 = scmp.eq.s32.totalorder %s20, 0
    %p82 = por %p80, %p81
    %p83 = scmp.ne.s32.totalorder %s75, %s77
    %p84 = scmp.eq.s32.totalorder %s25, 1
    %p85 = por %p83, %p84
    %p86 = scmp.ne.s32.totalorder %s77, %s78
    %p87 = scmp.eq.s32.totalorder %s25, 0
    %p88 = por %p86, %p87
    %p89 = scmp.ne.s32.totalorder %s77, %s78
    %p90 = scmp.eq.s32.totalorder %s26, 1
    %p91 = por %p89, %p90
    %p93 = scmp.ne.s32.totalorder %s78, %s92
    %p94 = scmp.eq.s32.totalorder %s26, 0
    %p95 = por %p93, %p94
    %s97 = sadd.s32 %s96, 1
    %p100 = scmp.eq.s32.totalorder %s20, 1
    %p101 = scmp.ne.s32.totalorder %s96, %s98
    %p102 = scmp.eq.s32.totalorder %s20, 0
    %p103 = por %p101, %p102
    %p104 = scmp.ne.s32.totalorder %s96, %s98
    %p105 = scmp.eq.s32.totalorder %s25, 1
    %p106 = por %p104, %p105
    %p107 = scmp.ne.s32.totalorder %s98, %s99
    %p108 = scmp.eq.s32.totalorder %s25, 0
    %p109 = por %p107, %p108
    %p110 = scmp.ne.s32.totalorder %s98, %s99
    %p111 = scmp.eq.s32.totalorder %s26, 1
    %p112 = por %p110, %p111
    %p114 = scmp.ne.s32.totalorder %s99, %s113
    %p115 = scmp.eq.s32.totalorder %s26, 0
    %p116 = por %p114, %p115
    %s118 = sadd.s32 %s117, 1
    %p121 = scmp.eq.s32.totalorder %s20, 1
    %p122 = scmp.ne.s32.totalorder %s117, %s119
    %p123 = scmp.eq.s32.totalorder %s20, 0
    %p124 = por %p122, %p123
    %p125 = scmp.ne.s32.totalorder %s117, %s119
    %p126 = scmp.eq.s32.totalorder %s25, 1
    %p127 = por %p125, %p126
    %p128 = scmp.ne.s32.totalorder %s119, %s120
    %p129 = scmp.eq.s32.totalorder %s25, 0
    %p130 = por %p128, %p129
    %p131 = scmp.ne.s32.totalorder %s119, %s120
    %p132 = scmp.eq.s32.totalorder %s26, 1
    %p133 = por %p131, %p132
    %p135 = scmp.ne.s32.totalorder %s120, %s134
    %p136 = scmp.eq.s32.totalorder %s26, 0
    %p137 = por %p135, %p136
    %s139 = sadd.s32 %s138, 1
    %p142 = scmp.eq.s32.totalorder %s20, 1
    %p143 = scmp.ne.s32.totalorder %s138, %s140
    %p144 = scmp.eq.s32.totalorder %s20, 0
    %p145 = por %p143, %p144
    %p146 = scmp.ne.s32.totalorder %s138, %s140
    %p147 = scmp.eq.s32.totalorder %s25, 1
    %p148 = por %p146, %p147
    %p149 = scmp.ne.s32.totalorder %s140, %s141
    %p150 = scmp.eq.s32.totalorder %s25, 0
    %p151 = por %p149, %p150
    %p152 = scmp.ne.s32.totalorder %s140, %s141
    %p153 = scmp.eq.s32.totalorder %s26, 1
    %p154 = por %p152, %p153
    %p156 = scmp.ne.s32.totalorder %s141, %s155
    %p157 = scmp.eq.s32.totalorder %s26, 0
    %p158 = por %p156, %p157
    %s160 = sadd.s32 %s159, 1
    %p163 = scmp.eq.s32.totalorder %s20, 1
    %p164 = scmp.ne.s32.totalorder %s159, %s161
    %p165 = scmp.eq.s32.totalorder %s20, 0
    %p166 = por %p164, %p165
    %p167 = scmp.ne.s32.totalorder %s159, %s161
    %p168 = scmp.eq.s32.totalorder %s25, 1
    %p169 = por %p167, %p168
    %p170 = scmp.ne.s32.totalorder %s161, %s162
    %p171 = scmp.eq.s32.totalorder %s25, 0
    %p172 = por %p170, %p171
    %p173 = scmp.ne.s32.totalorder %s161, %s162
    %p174 = scmp.eq.s32.totalorder %s26, 1
    %p175 = por %p173, %p174
    %p177 = scmp.ne.s32.totalorder %s162, %s176
    %p178 = scmp.eq.s32.totalorder %s26, 0
    %p179 = por %p177, %p178
    %s181 = sadd.s32 %s180, 1
    %p184 = scmp.eq.s32.totalorder %s20, 1
    %p185 = scmp.ne.s32.totalorder %s180, %s182
    %p186 = scmp.eq.s32.totalorder %s20, 0
    %p187 = por %p185, %p186
    %p188 = scmp.ne.s32.totalorder %s180, %s182
    %p189 = scmp.eq.s32.totalorder %s25, 1
    %p190 = por %p188, %p189
    %p191 = scmp.ne.s32.totalorder %s182, %s183
    %p192 = scmp.eq.s32.totalorder %s25, 0
    %p193 = por %p191, %p192
    %p194 = scmp.ne.s32.totalorder %s182, %s183
    %p195 = scmp.eq.s32.totalorder %s26, 1
    %p196 = por %p194, %p195
    %p198 = scmp.ne.s32.totalorder %s183, %s197
    %p199 = scmp.eq.s32.totalorder %s26, 0
    %p200 = por %p198, %p199
    %s202 = sadd.s32 %s201, 1
    %p205 = scmp.eq.s32.totalorder %s20, 1
    %p206 = scmp.ne.s32.totalorder %s201, %s203
    %p207 = scmp.eq.s32.totalorder %s20, 0
    %p208 = por %p206, %p207
    %p209 = scmp.ne.s32.totalorder %s201, %s203
    %p210 = scmp.eq.s32.totalorder %s25, 1
    %p211 = por %p209, %p210
    %p212 = scmp.ne.s32.totalorder %s203, %s204
    %p213 = scmp.eq.s32.totalorder %s25, 0
    %p214 = por %p212, %p213
    %p215 = scmp.ne.s32.totalorder %s203, %s204
    %p216 = scmp.eq.s32.totalorder %s26, 1
    %p217 = por %p215, %p216
    %p219 = scmp.ne.s32.totalorder %s204, %s218
    %p220 = scmp.eq.s32.totalorder %s26, 0
    %p221 = por %p219, %p220
    %s223 = sadd.s32 %s222, 1
    %p226 = scmp.eq.s32.totalorder %s20, 1
    %p227 = scmp.ne.s32.totalorder %s222, %s224
    %p228 = scmp.eq.s32.totalorder %s20, 0
    %p229 = por %p227, %p228
    %p230 = scmp.ne.s32.totalorder %s222, %s224
    %p231 = scmp.eq.s32.totalorder %s25, 1
    %p232 = por %p230, %p231
    %p233 = scmp.ne.s32.totalorder %s224, %s225
    %p234 = scmp.eq.s32.totalorder %s25, 0
    %p235 = por %p233, %p234
    %p236 = scmp.ne.s32.totalorder %s224, %s225
    %p237 = scmp.eq.s32.totalorder %s26, 1
    %p238 = por %p236, %p237
    %p240 = scmp.ne.s32.totalorder %s225, %s239
    %p241 = scmp.eq.s32.totalorder %s26, 0
    %p242 = por %p240, %p241
    %s244 = sadd.s32 %s243, 1
    %p247 = scmp.eq.s32.totalorder %s20, 1
    %p248 = scmp.ne.s32.totalorder %s243, %s245
    %p249 = scmp.eq.s32.totalorder %s20, 0
    %p250 = por %p248, %p249
    %p251 = scmp.ne.s32.totalorder %s243, %s245
    %p252 = scmp.eq.s32.totalorder %s25, 1
    %p253 = por %p251, %p252
    %p254 = scmp.ne.s32.totalorder %s245, %s246
    %p255 = scmp.eq.s32.totalorder %s25, 0
    %p256 = por %p254, %p255
    %p257 = scmp.ne.s32.totalorder %s245, %s246
    %p258 = scmp.eq.s32.totalorder %s26, 1
    %p259 = por %p257, %p258
    %p261 = scmp.ne.s32.totalorder %s246, %s260
    %p262 = scmp.eq.s32.totalorder %s26, 0
    %p263 = por %p261, %p262
    %s265 = sadd.s32 %s264, 1
    %p268 = scmp.eq.s32.totalorder %s20, 1
    %p269 = scmp.ne.s32.totalorder %s264, %s266
    %p270 = scmp.eq.s32.totalorder %s20, 0
    %p271 = por %p269, %p270
    %p272 = scmp.ne.s32.totalorder %s264, %s266
    %p273 = scmp.eq.s32.totalorder %s25, 1
    %p274 = por %p272, %p273
    %p275 = scmp.ne.s32.totalorder %s266, %s267
    %p276 = scmp.eq.s32.totalorder %s25, 0
    %p277 = por %p275, %p276
    %p278 = scmp.ne.s32.totalorder %s266, %s267
    %p279 = scmp.eq.s32.totalorder %s26, 1
    %p280 = por %p278, %p279
    %p282 = scmp.ne.s32.totalorder %s267, %s281
    %p283 = scmp.eq.s32.totalorder %s26, 0
    %p284 = por %p282, %p283
    %s286 = sadd.s32 %s285, 1
    %p289 = scmp.eq.s32.totalorder %s20, 1
    %p290 = scmp.ne.s32.totalorder %s285, %s287
    %p291 = scmp.eq.s32.totalorder %s20, 0
    %p292 = por %p290, %p291
    %p293 = scmp.ne.s32.totalorder %s285, %s287
    %p294 = scmp.eq.s32.totalorder %s25, 1
    %p295 = por %p293, %p294
    %p296 = scmp.ne.s32.totalorder %s287, %s288
    %p297 = scmp.eq.s32.totalorder %s25, 0
    %p298 = por %p296, %p297
    %p299 = scmp.ne.s32.totalorder %s287, %s288
    %p300 = scmp.eq.s32.totalorder %s26, 1
    %p301 = por %p299, %p300
    %p303 = scmp.ne.s32.totalorder %s288, %s302
    %p304 = scmp.eq.s32.totalorder %s26, 0
    %p305 = por %p303, %p304
    %s307 = sadd.s32 %s306, 1
    %p310 = scmp.eq.s32.totalorder %s20, 1
    %p311 = scmp.ne.s32.totalorder %s306, %s308
    %p312 = scmp.eq.s32.totalorder %s20, 0
    %p313 = por %p311, %p312
    %p314 = scmp.ne.s32.totalorder %s306, %s308
    %p315 = scmp.eq.s32.totalorder %s25, 1
    %p316 = por %p314, %p315
    %p317 = scmp.ne.s32.totalorder %s308, %s309
    %p318 = scmp.eq.s32.totalorder %s25, 0
    %p319 = por %p317, %p318
    %p320 = scmp.ne.s32.totalorder %s308, %s309
    %p321 = scmp.eq.s32.totalorder %s26, 1
    %p322 = por %p320, %p321
    %p324 = scmp.ne.s32.totalorder %s309, %s323
    %p325 = scmp.eq.s32.totalorder %s26, 0
    %p326 = por %p324, %p325
    %s327 = ssub.s32 %s20, %s27
    %p328 = scmp.eq.s32.totalorder %s327, 0
    %s330 = sadd.s32 %s329, 1
    %s331 = scalar_select %p328, %s329, %s330
    %p334 = pneg %p328
    %p335 = scmp.eq.s32.totalorder %s20, 1
    %p336 = por %p334, %p335
    %p337 = scmp.ne.s32.totalorder %s329, %s332
    %p338 = scmp.eq.s32.totalorder %s20, 0
    %p339 = por %p337, %p338
    %p340 = scmp.ne.s32.totalorder %s329, %s332
    %p341 = scmp.eq.s32.totalorder %s25, 1
    %p342 = por %p340, %p341
    %p343 = scmp.ne.s32.totalorder %s332, %s333
    %p344 = scmp.eq.s32.totalorder %s25, 0
    %p345 = por %p343, %p344
    %p346 = scmp.ne.s32.totalorder %s332, %s333
    %p347 = scmp.eq.s32.totalorder %s26, 1
    %p348 = por %p346, %p347
    %p350 = scmp.ne.s32.totalorder %s333, %s349
    %p351 = scmp.eq.s32.totalorder %s26, 0
    %p352 = por %p350, %p351
    %p353 = scmp.le.s32.totalorder 1, %s20
    %p354 = scmp.lt.s32.totalorder %s20, 3
    %p355 = pnand %p353, %p354
    %p356 = pneg %p355
    // Predicated region
    $region9: #{transformer_forward.2} parent=5 // pred_check
      _
    $region10: #{transformer_forward.2} parent=5 // pred_check_branch
      %358 = sbr.rel (%p355) target = $region12
    $region11: #{transformer_forward.2} parent=5 // pred_region
      %s359 = ssub.s32 %s20, 1
      // Predicated region
      $region13: #{transformer_forward.2} parent=11 // pred_check
        %p360 = pneg %p67
      $region14: #{transformer_forward.2} parent=11 // pred_check_branch
        %362 = sbr.rel (%p360) target = $region16
      $region15: #{transformer_forward.2} parent=11 // pred_region
        _
      $region16: #{transformer_forward.2} parent=11 // pred_fallthru
        _
      // Predicated region
      $region17: #{transformer_forward.2} parent=11 // pred_check
        %p363 = pneg %p88
      $region18: #{transformer_forward.2} parent=11 // pred_check_branch
        %365 = sbr.rel (%p363) target = $region20
      $region19: #{transformer_forward.2} parent=11 // pred_region
        _
      $region20: #{transformer_forward.2} parent=11 // pred_fallthru
        _
      // Predicated region
      $region21: #{transformer_forward.2} parent=11 // pred_check
        %p366 = pneg %p109
      $region22: #{transformer_forward.2} parent=11 // pred_check_branch
        %368 = sbr.rel (%p366) target = $region24
      $region23: #{transformer_forward.2} parent=11 // pred_region
        _
      $region24: #{transformer_forward.2} parent=11 // pred_fallthru
        _
      // Predicated region
      $region25: #{transformer_forward.2} parent=11 // pred_check
        %p369 = pneg %p130
      $region26: #{transformer_forward.2} parent=11 // pred_check_branch
        %371 = sbr.rel (%p369) target = $region28
      $region27: #{transformer_forward.2} parent=11 // pred_region
        _
      $region28: #{transformer_forward.2} parent=11 // pred_fallthru
        _
      // Predicated region
      $region29: #{transformer_forward.2} parent=11 // pred_check
        %p372 = pneg %p151
      $region30: #{transformer_forward.2} parent=11 // pred_check_branch
        %374 = sbr.rel (%p372) target = $region32
      $region31: #{transformer_forward.2} parent=11 // pred_region
        _
      $region32: #{transformer_forward.2} parent=11 // pred_fallthru
        _
      // Predicated region
      $region33: #{transformer_forward.2} parent=11 // pred_check
        %p375 = pneg %p172
      $region34: #{transformer_forward.2} parent=11 // pred_check_branch
        %377 = sbr.rel (%p375) target = $region36
      $region35: #{transformer_forward.2} parent=11 // pred_region
        _
      $region36: #{transformer_forward.2} parent=11 // pred_fallthru
        _
      // Predicated region
      $region37: #{transformer_forward.2} parent=11 // pred_check
        %p378 = pneg %p193
      $region38: #{transformer_forward.2} parent=11 // pred_check_branch
        %380 = sbr.rel (%p378) target = $region40
      $region39: #{transformer_forward.2} parent=11 // pred_region
        _
      $region40: #{transformer_forward.2} parent=11 // pred_fallthru
        _
      // Predicated region
      $region41: #{transformer_forward.2} parent=11 // pred_check
        %p381 = pneg %p214
      $region42: #{transformer_forward.2} parent=11 // pred_check_branch
        %383 = sbr.rel (%p381) target = $region44
      $region43: #{transformer_forward.2} parent=11 // pred_region
        _
      $region44: #{transformer_forward.2} parent=11 // pred_fallthru
        _
      // Predicated region
      $region45: #{transformer_forward.2} parent=11 // pred_check
        %p384 = pneg %p235
      $region46: #{transformer_forward.2} parent=11 // pred_check_branch
        %386 = sbr.rel (%p384) target = $region48
      $region47: #{transformer_forward.2} parent=11 // pred_region
        _
      $region48: #{transformer_forward.2} parent=11 // pred_fallthru
        _
      // Predicated region
      $region49: #{transformer_forward.2} parent=11 // pred_check
        %p387 = pneg %p256
      $region50: #{transformer_forward.2} parent=11 // pred_check_branch
        %389 = sbr.rel (%p387) target = $region52
      $region51: #{transformer_forward.2} parent=11 // pred_region
        _
      $region52: #{transformer_forward.2} parent=11 // pred_fallthru
        _
      // Predicated region
      $region53: #{transformer_forward.2} parent=11 // pred_check
        %p390 = pneg %p277
      $region54: #{transformer_forward.2} parent=11 // pred_check_branch
        %392 = sbr.rel (%p390) target = $region56
      $region55: #{transformer_forward.2} parent=11 // pred_region
        _
      $region56: #{transformer_forward.2} parent=11 // pred_fallthru
        _
      // Predicated region
      $region57: #{transformer_forward.2} parent=11 // pred_check
        %p393 = pneg %p298
      $region58: #{transformer_forward.2} parent=11 // pred_check_branch
        %395 = sbr.rel (%p393) target = $region60
      $region59: #{transformer_forward.2} parent=11 // pred_region
        _
      $region60: #{transformer_forward.2} parent=11 // pred_fallthru
        _
      // Predicated region
      $region61: #{transformer_forward.2} parent=11 // pred_check
        %p396 = pneg %p319
      $region62: #{transformer_forward.2} parent=11 // pred_check_branch
        %398 = sbr.rel (%p396) target = $region64
      $region63: #{transformer_forward.2} parent=11 // pred_region
        _
      $region64: #{transformer_forward.2} parent=11 // pred_fallthru
        _
    $region12: #{transformer_forward.2} parent=5 // pred_fallthru
      _
    %p399 = scmp.lt.s32.totalorder %s20, 2
    // Predicated region
    $region65: #{transformer_forward.2} parent=5 // pred_check
      %p400 = pneg %p399
    $region66: #{transformer_forward.2} parent=5 // pred_check_branch
      %402 = sbr.rel (%p400) target = $region68
    $region67: #{transformer_forward.2} parent=5 // pred_region
      // Predicated region
      $region69: #{transformer_forward.2} parent=67 // pred_check
        %p403 = pneg %p40
      $region70: #{transformer_forward.2} parent=67 // pred_check_branch
        %405 = sbr.rel (%p403) target = $region72
      $region71: #{transformer_forward.2} parent=67 // pred_region
        %p406 = scmp.lt.s32.totalorder %s20, 1
        %s407 = scalar_select %p406, %s20, 1
        %s408 = smul.addr %s407, 2
        %s409 = smul.addr %s408, 8
        %s410 = scalar_lea.vmem %s0, %s409
      $region72: #{transformer_forward.2} parent=67 // pred_fallthru
        _
    $region68: #{transformer_forward.2} parent=5 // pred_fallthru
      _
    %p411 = scmp.le.s32.totalorder 1, %s20
    %p412 = scmp.lt.s32.totalorder %s20, 3
    %p413 = pnand %p411, %p412
    %p414 = pneg %p413
    // Predicated region
    $region73: #{transformer_forward.2} parent=5 // pred_check
      _
    $region74: #{transformer_forward.2} parent=5 // pred_check_branch
      %416 = sbr.rel (%p413) target = $region76
    $region75: #{transformer_forward.2} parent=5 // pred_region
      %s417 = ssub.s32 %s20, 1
      %p418 = scmp.lt.s32.totalorder %s25, 1
      %s419 = scalar_select %p418, %s25, 1
      %s420 = smul.addr %s419, 2
      %s421 = smul.addr %s420, 8
      %s422 = scalar_lea.vmem %s0, %s421
      %p423 = pneg %p46
      %p424 = pneg %p43
      %p425 = pneg %p67
      %p426 = pneg %p64
      %p427 = pneg %p88
      %p428 = pneg %p85
      %p429 = pneg %p109
      %p430 = pneg %p106
      %p431 = pneg %p130
      %p432 = pneg %p127
      %p433 = pneg %p151
      %p434 = pneg %p148
      %p435 = pneg %p172
      %p436 = pneg %p169
      %p437 = pneg %p193
      %p438 = pneg %p190
      %p439 = pneg %p214
      %p440 = pneg %p211
      %p441 = pneg %p235
      %p442 = pneg %p232
      %p443 = pneg %p256
      %p444 = pneg %p253
      %p445 = pneg %p277
      %p446 = pneg %p274
      %p447 = pneg %p298
      %p448 = pneg %p295
      %p449 = pneg %p319
      %p450 = pneg %p316
      %p451 = pneg %p345
      %p452 = pneg %p342
      %p453 = scmp.lt.s32.totalorder %s25, 1
      %s454 = scalar_select %p453, %s25, 1
      %s455 = smul.addr %s454, 2
      %s456 = smul.addr %s455, 8
      %s457 = scalar_lea.vmem %s14, %s456
      %p458 = scmp.lt.s32.totalorder %s25, 1
      %s459 = scalar_select %p458, %s25, 1
      %s460 = smul.addr %s459, 2
      %s461 = smul.addr %s460, 8
      %s462 = scalar_lea.vmem %s0, %s461
      %p463 = scmp.lt.s32.totalorder %s25, 1
      %s464 = scalar_select %p463, %s25, 1
      %s465 = smul.addr %s464, 2
      %s466 = smul.addr %s465, 8
      %s467 = scalar_lea.vmem %s14, %s466
      %v469 = vld [vmem:[%s462] sm:$0xff]
      %v470 = vld [vmem:[%s462 + $0x8] sm:$0xff]
      %v471 = vld [vmem:[%s2] sm:$0x1]
      %v472 = vld [vmem:[%s3] sm:$0x1]
      %vm473 = vcmask 261120
      %v474 = vsel %vm473, %v469, 0.0
      %475 = vadd.xlane.f32.xlu0 %v474
      %v476 = vpop.xlane.xlu0 %475
      %v477 = vsel %vm473, %v470, 0.0
      %478 = vadd.xlane.f32.xlu0 %v477
      %v479 = vpop.xlane.xlu0 %478
      %v480 = vrcp.pop 32.0
      %v481 = vmul.f32 %v476, %v480
      %v482 = vmul.f32 %v479, %v480
      %v483 = vsub.f32 %v469, %v481
      %v484 = vsub.f32 %v470, %v482
      %v485 = vmul.f32 %v483, %v483
      %v486 = vmul.f32 %v484, %v484
      %v487 = vsel %vm473, %v485, 0.0
      %488 = vadd.xlane.f32.xlu0 %v487
      %v489 = vpop.xlane.xlu0 %488
      %v490 = vsel %vm473, %v486, 0.0
      %491 = vadd.xlane.f32.xlu0 %v490
      %v492 = vpop.xlane.xlu0 %491
      %v493 = vmul.f32 %v489, %v480
      %v494 = vmul.f32 %v492, %v480
      %v495 = vadd.f32 %v493, 1e-05
      %v496 = vadd.f32 %v494, 1e-05
      %v497 = vrsqrt.pop %v495
      %v498 = vrsqrt.pop %v496
      %v499 = vmul.f32 %v483, %v497
      %v500 = vmul.f32 %v484, %v498
      %v502 = vlaneseq
      %v503 = vshrl.u32 %v502, 7
      %v504 = vsub.s32 0, %v503
      %v505 = vrot.slane %v471, %v504
      %v507 = vmul.f32 %v499, %v505
      %v508 = vmul.f32 %v500, %v505
      %v510 = vlaneseq
      %v511 = vshrl.u32 %v510, 7
      %v512 = vsub.s32 0, %v511
      %v513 = vrot.slane %v472, %v512
      %v515 = vadd.f32 %v507, %v513
      %v516 = vadd.f32 %v508, %v513
      %v517 = vpack.c.bf16 %v516, %v515
      %v518 = vld [vmem:[%s4] sm:$0xf]
      %v519 = vld [vmem:[%s4 + $0x4] sm:$0xf]
      %v520 = vld [vmem:[%s4 + $0x8] sm:$0xf]
      %v521 = vld [vmem:[%s4 + $0xc] sm:$0xf]
      %v522 = vld [vmem:[%s5] sm:$0x1]
      %v524 = vlaneseq
      %v525 = vshrl.u32 %v524, 7
      %v526 = vsub.s32 0, %v525
      %v527 = vrot.slane %v522, %v526
      %v533 = vunpack.c.l.b16 %v518
      %v534 = vunpack.c.l.b16 %v519
      %v535 = vunpack.c.l.b16 %v520
      %v536 = vunpack.c.l.b16 %v521
      %v537 = vpack.c.b16 %v534, %v533
      %v538 = vpack.c.b16 %v536, %v535
      %v542 = vsel %vm473, %v517, 0
      %544 = vmatprep.subr.bf16.mxu0 0
      %545 = vmatpush1.bf16.msra.mxu0 0
      %546 = vmatprep.subr.bf16.mxu0 0
      %547 = vmatpush1.bf16.msra.mxu0 0
      %548 = vmatprep.subr.bf16.mxu0 0
      %549 = vmatpush1.bf16.msra.mxu0 0
      %550 = vmatprep.subr.bf16.mxu0 0
      %551 = vmatpush1.bf16.msra.mxu0 0
      %552 = vmatprep.subr.bf16.mxu0 0
      %553 = vmatpush1.bf16.msra.mxu0 0
      %554 = vmatprep.subr.bf16.mxu0 0
      %555 = vmatpush1.bf16.msra.mxu0 0
      %556 = vmatprep.subr.bf16.mxu0 0
      %557 = vmatpush1.bf16.msra.mxu0 %v538
      %558 = vmatprep.subr.bf16.mxu0 0
      %559 = vmatpush1.bf16.msra.mxu0 %v537
      %560 = vmatprep.subr.bf16.mxu0 0
      %561 = vmatpush2.bf16.msra.mxu0 0
      %562 = vmatprep.subr.bf16.mxu0 0
      %563 = vmatpush2.bf16.msra.mxu0 0
      %564 = vmatprep.subr.bf16.mxu0 0
      %565 = vmatpush2.bf16.msra.mxu0 0
      %566 = vmatprep.subr.bf16.mxu0 0
      %567 = vmatpush2.bf16.msra.mxu0 0
      %568 = vmatprep.subr.bf16.mxu0 0
      %569 = vmatpush2.bf16.msra.mxu0 0
      %570 = vmatprep.subr.bf16.mxu0 0
      %571 = vmatpush2.bf16.msra.mxu0 0
      %572 = vmatprep.subr.bf16.mxu0 0
      %573 = vmatpush2.bf16.msra.mxu0 0
      %574 = vmatprep.subr.bf16.mxu0 0
      %575 = vmatpush2.bf16.msra.mxu0 0
      %576 = vmatprep.mubr.bf16.mxu0 0
      %577 = vmatmul.mubr.bf16.gmra.mxu0 %v542
      %v578 = vpop.f32.mrf.mxu0
      %v579 = vadd.f32 %v527, %v578
      %v580 = vpop.f32.mrf.mxu0
      %v581 = vpop.f32.mrf.mxu0
      %v582 = vadd.f32 %v527, %v581
      %v583 = vpop.f32.mrf.mxu0
      %584 = vdwg.mxu0
      %v585 = vpack.c.bf16 %v582, %v579
      %v586 = vld [vmem:[%s1] sm:$0xff]
      %v587 = vld [vmem:[%s1 + $0x8] sm:$0xff]
      %589 = vrot.lane.b32.xlu0 %v585, 96
      %v590 = vpop.permute.xlu0 %589
      %vm591 = vcmask 64512
      %v593 = vsel %vm591, %v585, 0
      %v596 = vsel %vm591, %v590, 0
      %598 = vmatprep.subr.bf16.mxu0 0
      %599 = vmatpush1.bf16.xpose.msra.mxu0 0
      %600 = vmatprep.subr.bf16.mxu0 0
      %601 = vmatpush1.bf16.xpose.msra.mxu0 0
      %602 = vmatprep.subr.bf16.mxu0 0
      %603 = vmatpush1.bf16.xpose.msra.mxu0 0
      %604 = vmatprep.subr.bf16.mxu0 0
      %605 = vmatpush1.bf16.xpose.msra.mxu0 0
      %606 = vmatprep.subr.bf16.mxu0 0
      %607 = vmatpush1.bf16.xpose.msra.mxu0 0
      %608 = vmatprep.subr.bf16.mxu0 0
      %609 = vmatpush1.bf16.xpose.msra.mxu0 0
      %610 = vmatprep.subr.bf16.mxu0 0
      %611 = vmatpush1.bf16.xpose.msra.mxu0 0
      %612 = vmatprep.subr.bf16.mxu0 0
      %613 = vmatpush1.bf16.xpose.msra.mxu0 %v596
      %614 = vmatprep.subr.bf16.mxu0 0
      %615 = vmatpush2.bf16.xpose.msra.mxu0 0
      %616 = vmatprep.subr.bf16.mxu0 0
      %617 = vmatpush2.bf16.xpose.msra.mxu0 0
      %618 = vmatprep.subr.bf16.mxu0 0
      %619 = vmatpush2.bf16.xpose.msra.mxu0 0
      %620 = vmatprep.subr.bf16.mxu0 0
      %621 = vmatpush2.bf16.xpose.msra.mxu0 0
      %622 = vmatprep.subr.bf16.mxu0 0
      %623 = vmatpush2.bf16.xpose.msra.mxu0 0
      %624 = vmatprep.subr.bf16.mxu0 0
      %625 = vmatpush2.bf16.xpose.msra.mxu0 0
      %626 = vmatprep.subr.bf16.mxu0 0
      %627 = vmatpush2.bf16.xpose.msra.mxu0 0
      %628 = vmatprep.subr.bf16.mxu0 0
      %629 = vmatpush2.bf16.xpose.msra.mxu0 0
      %630 = vmatprep.mubr.bf16.mxu0 0
      %631 = vmatmul.mubr.bf16.gmra.mxu0 %v593
      %v632 = vpop.f32.mrf.mxu0
      %v633 = vadd.f32 %v586, %v632
      %v634 = vpop.f32.mrf.mxu0
      %v635 = vpop.f32.mrf.mxu0
      %v636 = vadd.f32 %v587, %v635
      %v637 = vpop.f32.mrf.mxu0
      %638 = vdwg.mxu0
      %vm639 = vcmask 130048
      %v640 = vsel %vm639, %v633, -inf
      %641 = vmax.xlane.f32.xlu0 %v640
      %v642 = vpop.xlane.xlu0 %641
      %v643 = vsel %vm639, %v636, -inf
      %644 = vmax.xlane.f32.xlu0 %v643
      %v645 = vpop.xlane.xlu0 %644
      %v646 = vsub.f32 %v633, %v642
      %v647 = vsub.f32 %v636, %v645
      %v648 = vmul.f32 %v646, 1.442695
      %v649 = vpow.pop %v648
      %v650 = vmul.f32 %v647, 1.442695
      %v651 = vpow.pop %v650
      %v652 = vsel %vm639, %v649, 0.0
      %653 = vadd.xlane.f32.xlu0 %v652
      %v654 = vpop.xlane.xlu0 %653
      %v655 = vsel %vm639, %v651, 0.0
      %656 = vadd.xlane.f32.xlu0 %v655
      %v657 = vpop.xlane.xlu0 %656
      %v658 = vrcp.pop %v654
      %v659 = vrcp.pop %v657
      %v660 = vmul.f32 %v649, %v658
      %v661 = vmul.f32 %v651, %v659
      %v662 = vpack.c.bf16 %v661, %v660
      %663 = vrot.lane.b32.xlu0 %v585, 64
      %v664 = vpop.permute.xlu0 %663
      %v667 = vsel %vm639, %v662, 0
      %669 = vmatprep.subr.bf16.mxu0 0
      %670 = vmatpush1.bf16.msra.mxu0 0
      %671 = vmatprep.subr.bf16.mxu0 0
      %672 = vmatpush1.bf16.msra.mxu0 0
      %673 = vmatprep.subr.bf16.mxu0 0
      %674 = vmatpush1.bf16.msra.mxu0 0
      %675 = vmatprep.subr.bf16.mxu0 0
      %676 = vmatpush1.bf16.msra.mxu0 0
      %677 = vmatprep.subr.bf16.mxu0 0
      %678 = vmatpush1.bf16.msra.mxu0 0
      %679 = vmatprep.subr.bf16.mxu0 0
      %680 = vmatpush1.bf16.msra.mxu0 0
      %681 = vmatprep.subr.bf16.mxu0 0
      %682 = vmatpush1.bf16.msra.mxu0 0
      %683 = vmatprep.subr.bf16.mxu0 0
      %684 = vmatpush1.bf16.msra.mxu0 %v664
      %685 = vmatprep.subr.bf16.mxu0 0
      %686 = vmatpush2.bf16.msra.mxu0 0
      %687 = vmatprep.subr.bf16.mxu0 0
      %688 = vmatpush2.bf16.msra.mxu0 0
      %689 = vmatprep.subr.bf16.mxu0 0
      %690 = vmatpush2.bf16.msra.mxu0 0
      %691 = vmatprep.subr.bf16.mxu0 0
      %692 = vmatpush2.bf16.msra.mxu0 0
      %693 = vmatprep.subr.bf16.mxu0 0
      %694 = vmatpush2.bf16.msra.mxu0 0
      %695 = vmatprep.subr.bf16.mxu0 0
      %696 = vmatpush2.bf16.msra.mxu0 0
      %697 = vmatprep.subr.bf16.mxu0 0
      %698 = vmatpush2.bf16.msra.mxu0 0
      %699 = vmatprep.subr.bf16.mxu0 0
      %700 = vmatpush2.bf16.msra.mxu0 0
      %701 = vmatprep.mubr.bf16.mxu0 0
      %702 = vmatmul.mubr.bf16.gmra.mxu0 %v667
      %v703 = vpop.f32.mrf.mxu0
      %v704 = vadd.f32 0.0, %v703
      %v705 = vpop.f32.mrf.mxu0
      %v706 = vpop.f32.mrf.mxu0
      %v707 = vadd.f32 0.0, %v706
      %v708 = vpop.f32.mrf.mxu0
      %709 = vdwg.mxu0
      %710 = vrot.lane.b32.xlu0 %v585, 120
      %v711 = vpop.permute.xlu0 %710
      %712 = vrot.lane.b32.xlu0 %v585, 88
      %v713 = vpop.permute.xlu0 %712
      %v715 = vsel %vm591, %v711, 0
      %v718 = vsel %vm591, %v713, 0
      %720 = vmatprep.subr.bf16.mxu0 0
      %721 = vmatpush1.bf16.xpose.msra.mxu0 0
      %722 = vmatprep.subr.bf16.mxu0 0
      %723 = vmatpush1.bf16.xpose.msra.mxu0 0
      %724 = vmatprep.subr.bf16.mxu0 0
      %725 = vmatpush1.bf16.xpose.msra.mxu0 0
      %726 = vmatprep.subr.bf16.mxu0 0
      %727 = vmatpush1.bf16.xpose.msra.mxu0 0
      %728 = vmatprep.subr.bf16.mxu0 0
      %729 = vmatpush1.bf16.xpose.msra.mxu0 0
      %730 = vmatprep.subr.bf16.mxu0 0
      %731 = vmatpush1.bf16.xpose.msra.mxu0 0
      %732 = vmatprep.subr.bf16.mxu0 0
      %733 = vmatpush1.bf16.xpose.msra.mxu0 0
      %734 = vmatprep.subr.bf16.mxu0 0
      %735 = vmatpush1.bf16.xpose.msra.mxu0 %v718
      %736 = vmatprep.subr.bf16.mxu0 0
      %737 = vmatpush2.bf16.xpose.msra.mxu0 0
      %738 = vmatprep.subr.bf16.mxu0 0
      %739 = vmatpush2.bf16.xpose.msra.mxu0 0
      %740 = vmatprep.subr.bf16.mxu0 0
      %741 = vmatpush2.bf16.xpose.msra.mxu0 0
      %742 = vmatprep.subr.bf16.mxu0 0
      %743 = vmatpush2.bf16.xpose.msra.mxu0 0
      %744 = vmatprep.subr.bf16.mxu0 0
      %745 = vmatpush2.bf16.xpose.msra.mxu0 0
      %746 = vmatprep.subr.bf16.mxu0 0
      %747 = vmatpush2.bf16.xpose.msra.mxu0 0
      %748 = vmatprep.subr.bf16.mxu0 0
      %749 = vmatpush2.bf16.xpose.msra.mxu0 0
      %750 = vmatprep.subr.bf16.mxu0 0
      %751 = vmatpush2.bf16.xpose.msra.mxu0 0
      %752 = vmatprep.mubr.bf16.mxu0 0
      %753 = vmatmul.mubr.bf16.gmra.mxu0 %v715
      %v754 = vpop.f32.mrf.mxu0
      %v755 = vadd.f32 %v586, %v754
      %v756 = vpop.f32.mrf.mxu0
      %v757 = vpop.f32.mrf.mxu0
      %v758 = vadd.f32 %v587, %v757
      %v759 = vpop.f32.mrf.mxu0
      %760 = vdwg.mxu0
      %v761 = vsel %vm639, %v755, -inf
      %762 = vmax.xlane.f32.xlu0 %v761
      %v763 = vpop.xlane.xlu0 %762
      %v764 = vsel %vm639, %v758, -inf
      %765 = vmax.xlane.f32.xlu0 %v764
      %v766 = vpop.xlane.xlu0 %765
      %v767 = vsub.f32 %v755, %v763
      %v768 = vsub.f32 %v758, %v766
      %v769 = vmul.f32 %v767, 1.442695
      %v770 = vpow.pop %v769
      %v771 = vmul.f32 %v768, 1.442695
      %v772 = vpow.pop %v771
      %v773 = vsel %vm639, %v770, 0.0
      %774 = vadd.xlane.f32.xlu0 %v773
      %v775 = vpop.xlane.xlu0 %774
      %v776 = vsel %vm639, %v772, 0.0
      %777 = vadd.xlane.f32.xlu0 %v776
      %v778 = vpop.xlane.xlu0 %777
      %v779 = vrcp.pop %v775
      %v780 = vrcp.pop %v778
      %v781 = vmul.f32 %v770, %v779
      %v782 = vmul.f32 %v772, %v780
      %v783 = vpack.c.bf16 %v782, %v781
      %784 = vrot.lane.b32.xlu0 %v585, 56
      %v785 = vpop.permute.xlu0 %784
      %v788 = vsel %vm639, %v783, 0
      %790 = vmatprep.subr.bf16.mxu0 0
      %791 = vmatpush1.bf16.msra.mxu0 0
      %792 = vmatprep.subr.bf16.mxu0 0
      %793 = vmatpush1.bf16.msra.mxu0 0
      %794 = vmatprep.subr.bf16.mxu0 0
      %795 = vmatpush1.bf16.msra.mxu0 0
      %796 = vmatprep.subr.bf16.mxu0 0
      %797 = vmatpush1.bf16.msra.mxu0 0
      %798 = vmatprep.subr.bf16.mxu0 0
      %799 = vmatpush1.bf16.msra.mxu0 0
      %800 = vmatprep.subr.bf16.mxu0 0
      %801 = vmatpush1.bf16.msra.mxu0 0
      %802 = vmatprep.subr.bf16.mxu0 0
      %803 = vmatpush1.bf16.msra.mxu0 0
      %804 = vmatprep.subr.bf16.mxu0 0
      %805 = vmatpush1.bf16.msra.mxu0 %v785
      %806 = vmatprep.subr.bf16.mxu0 0
      %807 = vmatpush2.bf16.msra.mxu0 0
      %808 = vmatprep.subr.bf16.mxu0 0
      %809 = vmatpush2.bf16.msra.mxu0 0
      %810 = vmatprep.subr.bf16.mxu0 0
      %811 = vmatpush2.bf16.msra.mxu0 0
      %812 = vmatprep.subr.bf16.mxu0 0
      %813 = vmatpush2.bf16.msra.mxu0 0
      %814 = vmatprep.subr.bf16.mxu0 0
      %815 = vmatpush2.bf16.msra.mxu0 0
      %816 = vmatprep.subr.bf16.mxu0 0
      %817 = vmatpush2.bf16.msra.mxu0 0
      %818 = vmatprep.subr.bf16.mxu0 0
      %819 = vmatpush2.bf16.msra.mxu0 0
      %820 = vmatprep.subr.bf16.mxu0 0
      %821 = vmatpush2.bf16.msra.mxu0 0
      %822 = vmatprep.mubr.bf16.mxu0 0
      %823 = vmatmul.mubr.bf16.gmra.mxu0 %v788
      %v824 = vpop.f32.mrf.mxu0
      %v825 = vadd.f32 0.0, %v824
      %v826 = vpop.f32.mrf.mxu0
      %v827 = vpop.f32.mrf.mxu0
      %v828 = vadd.f32 0.0, %v827
      %v829 = vpop.f32.mrf.mxu0
      %830 = vdwg.mxu0
      %831 = vrot.lane.b32.xlu0 %v585, 112
      %v832 = vpop.permute.xlu0 %831
      %833 = vrot.lane.b32.xlu0 %v585, 80
      %v834 = vpop.permute.xlu0 %833
      %v836 = vsel %vm591, %v832, 0
      %v839 = vsel %vm591, %v834, 0
      %841 = vmatprep.subr.bf16.mxu0 0
      %842 = vmatpush1.bf16.xpose.msra.mxu0 0
      %843 = vmatprep.subr.bf16.mxu0 0
      %844 = vmatpush1.bf16.xpose.msra.mxu0 0
      %845 = vmatprep.subr.bf16.mxu0 0
      %846 = vmatpush1.bf16.xpose.msra.mxu0 0
      %847 = vmatprep.subr.bf16.mxu0 0
      %848 = vmatpush1.bf16.xpose.msra.mxu0 0
      %849 = vmatprep.subr.bf16.mxu0 0
      %850 = vmatpush1.bf16.xpose.msra.mxu0 0
      %851 = vmatprep.subr.bf16.mxu0 0
      %852 = vmatpush1.bf16.xpose.msra.mxu0 0
      %853 = vmatprep.subr.bf16.mxu0 0
      %854 = vmatpush1.bf16.xpose.msra.mxu0 0
      %855 = vmatprep.subr.bf16.mxu0 0
      %856 = vmatpush1.bf16.xpose.msra.mxu0 %v839
      %857 = vmatprep.subr.bf16.mxu0 0
      %858 = vmatpush2.bf16.xpose.msra.mxu0 0
      %859 = vmatprep.subr.bf16.mxu0 0
      %860 = vmatpush2.bf16.xpose.msra.mxu0 0
      %861 = vmatprep.subr.bf16.mxu0 0
      %862 = vmatpush2.bf16.xpose.msra.mxu0 0
      %863 = vmatprep.subr.bf16.mxu0 0
      %864 = vmatpush2.bf16.xpose.msra.mxu0 0
      %865 = vmatprep.subr.bf16.mxu0 0
      %866 = vmatpush2.bf16.xpose.msra.mxu0 0
      %867 = vmatprep.subr.bf16.mxu0 0
      %868 = vmatpush2.bf16.xpose.msra.mxu0 0
      %869 = vmatprep.subr.bf16.mxu0 0
      %870 = vmatpush2.bf16.xpose.msra.mxu0 0
      %871 = vmatprep.subr.bf16.mxu0 0
      %872 = vmatpush2.bf16.xpose.msra.mxu0 0
      %873 = vmatprep.mubr.bf16.mxu0 0
      %874 = vmatmul.mubr.bf16.gmra.mxu0 %v836
      %v875 = vpop.f32.mrf.mxu0
      %v876 = vadd.f32 %v586, %v875
      %v877 = vpop.f32.mrf.mxu0
      %v878 = vpop.f32.mrf.mxu0
      %v879 = vadd.f32 %v587, %v878
      %v880 = vpop.f32.mrf.mxu0
      %881 = vdwg.mxu0
      %v882 = vsel %vm639, %v876, -inf
      %883 = vmax.xlane.f32.xlu0 %v882
      %v884 = vpop.xlane.xlu0 %883
      %v885 = vsel %vm639, %v879, -inf
      %886 = vmax.xlane.f32.xlu0 %v885
      %v887 = vpop.xlane.xlu0 %886
      %v888 = vsub.f32 %v876, %v884
      %v889 = vsub.f32 %v879, %v887
      %v890 = vmul.f32 %v888, 1.442695
      %v891 = vpow.pop %v890
      %v892 = vmul.f32 %v889, 1.442695
      %v893 = vpow.pop %v892
      %v894 = vsel %vm639, %v891, 0.0
      %895 = vadd.xlane.f32.xlu0 %v894
      %v896 = vpop.xlane.xlu0 %895
      %v897 = vsel %vm639, %v893, 0.0
      %898 = vadd.xlane.f32.xlu0 %v897
      %v899 = vpop.xlane.xlu0 %898
      %v900 = vrcp.pop %v896
      %v901 = vrcp.pop %v899
      %v902 = vmul.f32 %v891, %v900
      %v903 = vmul.f32 %v893, %v901
      %v904 = vpack.c.bf16 %v903, %v902
      %905 = vrot.lane.b32.xlu0 %v585, 48
      %v906 = vpop.permute.xlu0 %905
      %v909 = vsel %vm639, %v904, 0
      %911 = vmatprep.subr.bf16.mxu0 0
      %912 = vmatpush1.bf16.msra.mxu0 0
      %913 = vmatprep.subr.bf16.mxu0 0
      %914 = vmatpush1.bf16.msra.mxu0 0
      %915 = vmatprep.subr.bf16.mxu0 0
      %916 = vmatpush1.bf16.msra.mxu0 0
      %917 = vmatprep.subr.bf16.mxu0 0
      %918 = vmatpush1.bf16.msra.mxu0 0
      %919 = vmatprep.subr.bf16.mxu0 0
      %920 = vmatpush1.bf16.msra.mxu0 0
      %921 = vmatprep.subr.bf16.mxu0 0
      %922 = vmatpush1.bf16.msra.mxu0 0
      %923 = vmatprep.subr.bf16.mxu0 0
      %924 = vmatpush1.bf16.msra.mxu0 0
      %925 = vmatprep.subr.bf16.mxu0 0
      %926 = vmatpush1.bf16.msra.mxu0 %v906
      %927 = vmatprep.subr.bf16.mxu0 0
      %928 = vmatpush2.bf16.msra.mxu0 0
      %929 = vmatprep.subr.bf16.mxu0 0
      %930 = vmatpush2.bf16.msra.mxu0 0
      %931 = vmatprep.subr.bf16.mxu0 0
      %932 = vmatpush2.bf16.msra.mxu0 0
      %933 = vmatprep.subr.bf16.mxu0 0
      %934 = vmatpush2.bf16.msra.mxu0 0
      %935 = vmatprep.subr.bf16.mxu0 0
      %936 = vmatpush2.bf16.msra.mxu0 0
      %937 = vmatprep.subr.bf16.mxu0 0
      %938 = vmatpush2.bf16.msra.mxu0 0
      %939 = vmatprep.subr.bf16.mxu0 0
      %940 = vmatpush2.bf16.msra.mxu0 0
      %941 = vmatprep.subr.bf16.mxu0 0
      %942 = vmatpush2.bf16.msra.mxu0 0
      %943 = vmatprep.mubr.bf16.mxu0 0
      %944 = vmatmul.mubr.bf16.gmra.mxu0 %v909
      %v945 = vpop.f32.mrf.mxu0
      %v946 = vadd.f32 0.0, %v945
      %v947 = vpop.f32.mrf.mxu0
      %v948 = vpop.f32.mrf.mxu0
      %v949 = vadd.f32 0.0, %v948
      %v950 = vpop.f32.mrf.mxu0
      %951 = vdwg.mxu0
      %952 = vrot.lane.b32.xlu0 %v585, 104
      %v953 = vpop.permute.xlu0 %952
      %954 = vrot.lane.b32.xlu0 %v585, 72
      %v955 = vpop.permute.xlu0 %954
      %v957 = vsel %vm591, %v953, 0
      %v960 = vsel %vm591, %v955, 0
      %962 = vmatprep.subr.bf16.mxu0 0
      %963 = vmatpush1.bf16.xpose.msra.mxu0 0
      %964 = vmatprep.subr.bf16.mxu0 0
      %965 = vmatpush1.bf16.xpose.msra.mxu0 0
      %966 = vmatprep.subr.bf16.mxu0 0
      %967 = vmatpush1.bf16.xpose.msra.mxu0 0
      %968 = vmatprep.subr.bf16.mxu0 0
      %969 = vmatpush1.bf16.xpose.msra.mxu0 0
      %970 = vmatprep.subr.bf16.mxu0 0
      %971 = vmatpush1.bf16.xpose.msra.mxu0 0
      %972 = vmatprep.subr.bf16.mxu0 0
      %973 = vmatpush1.bf16.xpose.msra.mxu0 0
      %974 = vmatprep.subr.bf16.mxu0 0
      %975 = vmatpush1.bf16.xpose.msra.mxu0 0
      %976 = vmatprep.subr.bf16.mxu0 0
      %977 = vmatpush1.bf16.xpose.msra.mxu0 %v960
      %978 = vmatprep.subr.bf16.mxu0 0
      %979 = vmatpush2.bf16.xpose.msra.mxu0 0
      %980 = vmatprep.subr.bf16.mxu0 0
      %981 = vmatpush2.bf16.xpose.msra.mxu0 0
      %982 = vmatprep.subr.bf16.mxu0 0
      %983 = vmatpush2.bf16.xpose.msra.mxu0 0
      %984 = vmatprep.subr.bf16.mxu0 0
      %985 = vmatpush2.bf16.xpose.msra.mxu0 0
      %986 = vmatprep.subr.bf16.mxu0 0
      %987 = vmatpush2.bf16.xpose.msra.mxu0 0
      %988 = vmatprep.subr.bf16.mxu0 0
      %989 = vmatpush2.bf16.xpose.msra.mxu0 0
      %990 = vmatprep.subr.bf16.mxu0 0
      %991 = vmatpush2.bf16.xpose.msra.mxu0 0
      %992 = vmatprep.subr.bf16.mxu0 0
      %993 = vmatpush2.bf16.xpose.msra.mxu0 0
      %994 = vmatprep.mubr.bf16.mxu0 0
      %995 = vmatmul.mubr.bf16.gmra.mxu0 %v957
      %v996 = vpop.f32.mrf.mxu0
      %v997 = vadd.f32 %v586, %v996
      %v998 = vpop.f32.mrf.mxu0
      %v999 = vpop.f32.mrf.mxu0
      %v1000 = vadd.f32 %v587, %v999
      %v1001 = vpop.f32.mrf.mxu0
      %1002 = vdwg.mxu0
      %v1003 = vsel %vm639, %v997, -inf
      %1004 = vmax.xlane.f32.xlu0 %v1003
      %v1005 = vpop.xlane.xlu0 %1004
      %v1006 = vsel %vm639, %v1000, -inf
      %1007 = vmax.xlane.f32.xlu0 %v1006
      %v1008 = vpop.xlane.xlu0 %1007
      %v1009 = vsub.f32 %v997, %v1005
      %v1010 = vsub.f32 %v1000, %v1008
      %v1011 = vmul.f32 %v1009, 1.442695
      %v1012 = vpow.pop %v1011
      %v1013 = vmul.f32 %v1010, 1.442695
      %v1014 = vpow.pop %v1013
      %v1015 = vsel %vm639, %v1012, 0.0
      %1016 = vadd.xlane.f32.xlu0 %v1015
      %v1017 = vpop.xlane.xlu0 %1016
      %v1018 = vsel %vm639, %v1014, 0.0
      %1019 = vadd.xlane.f32.xlu0 %v1018
      %v1020 = vpop.xlane.xlu0 %1019
      %v1021 = vrcp.pop %v1017
      %v1022 = vrcp.pop %v1020
      %v1023 = vmul.f32 %v1012, %v1021
      %v1024 = vmul.f32 %v1014, %v1022
      %v1025 = vpack.c.bf16 %v1024, %v1023
      %1026 = vrot.lane.b32.xlu0 %v585, 40
      %v1027 = vpop.permute.xlu0 %1026
      %v1030 = vsel %vm639, %v1025, 0
      %1032 = vmatprep.subr.bf16.mxu0 0
      %1033 = vmatpush1.bf16.msra.mxu0 0
      %1034 = vmatprep.subr.bf16.mxu0 0
      %1035 = vmatpush1.bf16.msra.mxu0 0
      %1036 = vmatprep.subr.bf16.mxu0 0
      %1037 = vmatpush1.bf16.msra.mxu0 0
      %1038 = vmatprep.subr.bf16.mxu0 0
      %1039 = vmatpush1.bf16.msra.mxu0 0
      %1040 = vmatprep.subr.bf16.mxu0 0
      %1041 = vmatpush1.bf16.msra.mxu0 0
      %1042 = vmatprep.subr.bf16.mxu0 0
      %1043 = vmatpush1.bf16.msra.mxu0 0
      %1044 = vmatprep.subr.bf16.mxu0 0
      %1045 = vmatpush1.bf16.msra.mxu0 0
      %1046 = vmatprep.subr.bf16.mxu0 0
      %1047 = vmatpush1.bf16.msra.mxu0 %v1027
      %1048 = vmatprep.subr.bf16.mxu0 0
      %1049 = vmatpush2.bf16.msra.mxu0 0
      %1050 = vmatprep.subr.bf16.mxu0 0
      %1051 = vmatpush2.bf16.msra.mxu0 0
      %1052 = vmatprep.subr.bf16.mxu0 0
      %1053 = vmatpush2.bf16.msra.mxu0 0
      %1054 = vmatprep.subr.bf16.mxu0 0
      %1055 = vmatpush2.bf16.msra.mxu0 0
      %1056 = vmatprep.subr.bf16.mxu0 0
      %1057 = vmatpush2.bf16.msra.mxu0 0
      %1058 = vmatprep.subr.bf16.mxu0 0
      %1059 = vmatpush2.bf16.msra.mxu0 0
      %1060 = vmatprep.subr.bf16.mxu0 0
      %1061 = vmatpush2.bf16.msra.mxu0 0
      %1062 = vmatprep.subr.bf16.mxu0 0
      %1063 = vmatpush2.bf16.msra.mxu0 0
      %1064 = vmatprep.mubr.bf16.mxu0 0
      %1065 = vmatmul.mubr.bf16.gmra.mxu0 %v1030
      %v1066 = vpop.f32.mrf.mxu0
      %v1067 = vadd.f32 0.0, %v1066
      %v1068 = vpop.f32.mrf.mxu0
      %v1069 = vpop.f32.mrf.mxu0
      %v1070 = vadd.f32 0.0, %v1069
      %v1071 = vpop.f32.mrf.mxu0
      %1072 = vdwg.mxu0
      %1075 = vrot.lane.b32.xlu0 %v825, 8
      %v1076 = vpop.permute.xlu0 %1075
      %1077 = vrot.lane.b32.xlu0 %v828, 8
      %v1078 = vpop.permute.xlu0 %1077
      %1083 = vrot.lane.b32.xlu0 %v946, 16
      %v1084 = vpop.permute.xlu0 %1083
      %1085 = vrot.lane.b32.xlu0 %v949, 16
      %v1086 = vpop.permute.xlu0 %1085
      %1091 = vrot.lane.b32.xlu0 %v1067, 24
      %v1092 = vpop.permute.xlu0 %1091
      %1093 = vrot.lane.b32.xlu0 %v1070, 24
      %v1094 = vpop.permute.xlu0 %1093
      %v1097 = vsel %vm591, %v704, %v1076
      %v1098 = vsel %vm591, %v707, %v1078
      %v1099 = vsel %vm639, %v1097, %v1084
      %v1100 = vsel %vm639, %v1098, %v1086
      %vm1101 = vcmask 195584
      %v1102 = vsel %vm1101, %v1099, %v1092
      %v1103 = vsel %vm1101, %v1100, %v1094
      %v1104 = vpack.c.bf16 %v1103, %v1102
      %v1105 = vld [vmem:[%s6] sm:$0xf]
      %v1106 = vld [vmem:[%s6 + $0x4] sm:$0xf]
      %v1107 = vld [vmem:[%s6 + $0x8] sm:$0xf]
      %v1108 = vld [vmem:[%s6 + $0xc] sm:$0xf]
      %v1113 = vunpack.c.l.b16 %v1105
      %v1114 = vunpack.c.l.b16 %v1106
      %v1115 = vunpack.c.l.b16 %v1107
      %v1116 = vunpack.c.l.b16 %v1108
      %v1117 = vpack.c.b16 %v1114, %v1113
      %v1118 = vpack.c.b16 %v1116, %v1115
      %v1122 = vsel %vm473, %v1104, 0
      %1124 = vmatprep.subr.bf16.mxu0 0
      %1125 = vmatpush1.bf16.msra.mxu0 0
      %1126 = vmatprep.subr.bf16.mxu0 0
      %1127 = vmatpush1.bf16.msra.mxu0 0
      %1128 = vmatprep.subr.bf16.mxu0 0
      %1129 = vmatpush1.bf16.msra.mxu0 0
      %1130 = vmatprep.subr.bf16.mxu0 0
      %1131 = vmatpush1.bf16.msra.mxu0 0
      %1132 = vmatprep.subr.bf16.mxu0 0
      %1133 = vmatpush1.bf16.msra.mxu0 0
      %1134 = vmatprep.subr.bf16.mxu0 0
      %1135 = vmatpush1.bf16.msra.mxu0 0
      %1136 = vmatprep.subr.bf16.mxu0 0
      %1137 = vmatpush1.bf16.msra.mxu0 %v1118
      %1138 = vmatprep.subr.bf16.mxu0 0
      %1139 = vmatpush1.bf16.msra.mxu0 %v1117
      %1140 = vmatprep.subr.bf16.mxu0 0
      %1141 = vmatpush2.bf16.msra.mxu0 0
      %1142 = vmatprep.subr.bf16.mxu0 0
      %1143 = vmatpush2.bf16.msra.mxu0 0
      %1144 = vmatprep.subr.bf16.mxu0 0
      %1145 = vmatpush2.bf16.msra.mxu0 0
      %1146 = vmatprep.subr.bf16.mxu0 0
      %1147 = vmatpush2.bf16.msra.mxu0 0
      %1148 = vmatprep.subr.bf16.mxu0 0
      %1149 = vmatpush2.bf16.msra.mxu0 0
      %1150 = vmatprep.subr.bf16.mxu0 0
      %1151 = vmatpush2.bf16.msra.mxu0 0
      %1152 = vmatprep.subr.bf16.mxu0 0
      %1153 = vmatpush2.bf16.msra.mxu0 0
      %1154 = vmatprep.subr.bf16.mxu0 0
      %1155 = vmatpush2.bf16.msra.mxu0 0
      %1156 = vmatprep.mubr.bf16.mxu0 0
      %1157 = vmatmul.mubr.bf16.gmra.mxu0 %v1122
      %v1158 = vpop.f32.mrf.mxu0
      %v1159 = vadd.f32 0.0, %v1158
      %v1160 = vpop.f32.mrf.mxu0
      %v1161 = vpop.f32.mrf.mxu0
      %v1162 = vadd.f32 0.0, %v1161
      %v1163 = vpop.f32.mrf.mxu0
      %1164 = vdwg.mxu0
      %v1165 = vadd.f32 %v469, %v1159
      %v1166 = vadd.f32 %v470, %v1162
      %v1167 = vld [vmem:[%s7] sm:$0x1]
      %v1169 = vlaneseq
      %v1170 = vshrl.u32 %v1169, 7
      %v1171 = vsub.s32 0, %v1170
      %v1172 = vrot.slane %v1167, %v1171
      %v1174 = vadd.f32 %v1165, %v1172
      %v1175 = vadd.f32 %v1166, %v1172
      %v1176 = vld [vmem:[%s8] sm:$0x1]
      %v1177 = vld [vmem:[%s9] sm:$0x1]
      %v1178 = vsel %vm473, %v1174, 0.0
      %1179 = vadd.xlane.f32.xlu0 %v1178
      %v1180 = vpop.xlane.xlu0 %1179
      %v1181 = vsel %vm473, %v1175, 0.0
      %1182 = vadd.xlane.f32.xlu0 %v1181
      %v1183 = vpop.xlane.xlu0 %1182
      %v1184 = vmul.f32 %v1180, %v480
      %v1185 = vmul.f32 %v1183, %v480
      %v1186 = vsub.f32 %v1174, %v1184
      %v1187 = vsub.f32 %v1175, %v1185
      %v1188 = vmul.f32 %v1186, %v1186
      %v1189 = vmul.f32 %v1187, %v1187
      %v1190 = vsel %vm473, %v1188, 0.0
      %1191 = vadd.xlane.f32.xlu0 %v1190
      %v1192 = vpop.xlane.xlu0 %1191
      %v1193 = vsel %vm473, %v1189, 0.0
      %1194 = vadd.xlane.f32.xlu0 %v1193
      %v1195 = vpop.xlane.xlu0 %1194
      %v1196 = vmul.f32 %v1192, %v480
      %v1197 = vmul.f32 %v1195, %v480
      %v1198 = vadd.f32 %v1196, 1e-05
      %v1199 = vadd.f32 %v1197, 1e-05
      %v1200 = vrsqrt.pop %v1198
      %v1201 = vrsqrt.pop %v1199
      %v1202 = vmul.f32 %v1186, %v1200
      %v1203 = vmul.f32 %v1187, %v1201
      %v1205 = vlaneseq
      %v1206 = vshrl.u32 %v1205, 7
      %v1207 = vsub.s32 0, %v1206
      %v1208 = vrot.slane %v1176, %v1207
      %v1210 = vmul.f32 %v1202, %v1208
      %v1211 = vmul.f32 %v1203, %v1208
      %v1213 = vlaneseq
      %v1214 = vshrl.u32 %v1213, 7
      %v1215 = vsub.s32 0, %v1214
      %v1216 = vrot.slane %v1177, %v1215
      %v1218 = vadd.f32 %v1210, %v1216
      %v1219 = vadd.f32 %v1211, %v1216
      %v1220 = vpack.c.bf16 %v1219, %v1218
      %v1221 = vld [vmem:[%s10] sm:$0xf]
      %v1222 = vld [vmem:[%s10 + $0x4] sm:$0xf]
      %v1223 = vld [vmem:[%s10 + $0x8] sm:$0xf]
      %v1224 = vld [vmem:[%s10 + $0xc] sm:$0xf]
      %v1225 = vld [vmem:[%s11] sm:$0x1]
      %v1227 = vlaneseq
      %v1228 = vshrl.u32 %v1227, 7
      %v1229 = vsub.s32 0, %v1228
      %v1230 = vrot.slane %v1225, %v1229
      %v1236 = vunpack.c.l.b16 %v1221
      %v1237 = vunpack.c.l.b16 %v1222
      %v1238 = vunpack.c.l.b16 %v1223
      %v1239 = vunpack.c.l.b16 %v1224
      %v1240 = vpack.c.b16 %v1237, %v1236
      %v1241 = vpack.c.b16 %v1239, %v1238
      %v1245 = vsel %vm473, %v1220, 0
      %1247 = vmatprep.subr.bf16.mxu0 0
      %1248 = vmatpush1.bf16.msra.mxu0 0
      %1249 = vmatprep.subr.bf16.mxu0 0
      %1250 = vmatpush1.bf16.msra.mxu0 0
      %1251 = vmatprep.subr.bf16.mxu0 0
      %1252 = vmatpush1.bf16.msra.mxu0 0
      %1253 = vmatprep.subr.bf16.mxu0 0
      %1254 = vmatpush1.bf16.msra.mxu0 0
      %1255 = vmatprep.subr.bf16.mxu0 0
      %1256 = vmatpush1.bf16.msra.mxu0 0
      %1257 = vmatprep.subr.bf16.mxu0 0
      %1258 = vmatpush1.bf16.msra.mxu0 0
      %1259 = vmatprep.subr.bf16.mxu0 0
      %1260 = vmatpush1.bf16.msra.mxu0 %v1241
      %1261 = vmatprep.subr.bf16.mxu0 0
      %1262 = vmatpush1.bf16.msra.mxu0 %v1240
      %1263 = vmatprep.subr.bf16.mxu0 0
      %1264 = vmatpush2.bf16.msra.mxu0 0
      %1265 = vmatprep.subr.bf16.mxu0 0
      %1266 = vmatpush2.bf16.msra.mxu0 0
      %1267 = vmatprep.subr.bf16.mxu0 0
      %1268 = vmatpush2.bf16.msra.mxu0 0
      %1269 = vmatprep.subr.bf16.mxu0 0
      %1270 = vmatpush2.bf16.msra.mxu0 0
      %1271 = vmatprep.subr.bf16.mxu0 0
      %1272 = vmatpush2.bf16.msra.mxu0 0
      %1273 = vmatprep.subr.bf16.mxu0 0
      %1274 = vmatpush2.bf16.msra.mxu0 0
      %1275 = vmatprep.subr.bf16.mxu0 0
      %1276 = vmatpush2.bf16.msra.mxu0 0
      %1277 = vmatprep.subr.bf16.mxu0 0
      %1278 = vmatpush2.bf16.msra.mxu0 0
      %1279 = vmatprep.mubr.bf16.mxu0 0
      %1280 = vmatmul.mubr.bf16.gmra.mxu0 %v1245
      %v1281 = vpop.f32.mrf.mxu0
      %v1282 = vadd.f32 %v1230, %v1281
      %v1283 = vpop.f32.mrf.mxu0
      %v1284 = vpop.f32.mrf.mxu0
      %v1285 = vadd.f32 %v1230, %v1284
      %v1286 = vpop.f32.mrf.mxu0
      %1287 = vdwg.mxu0
      %v1288 = vmul.f32 %v1282, 1.702
      %v1289 = vmul.f32 %v1285, 1.702
      %v1290 = vxor.u32 %v1288, 2147483648
      %v1291 = vxor.u32 %v1289, 2147483648
      %v1292 = vmul.f32 %v1290, 1.442695
      %v1293 = vpow.pop %v1292
      %v1294 = vmul.f32 %v1291, 1.442695
      %v1295 = vpow.pop %v1294
      %v1296 = vadd.f32 %v1293, 1.0
      %v1297 = vadd.f32 %v1295, 1.0
      %v1298 = vrcp.pop %v1296
      %v1299 = vmul.f32 1.0, %v1298
      %v1300 = vrcp.pop %v1297
      %v1301 = vmul.f32 1.0, %v1300
      %v1302 = vmul.f32 %v1282, %v1299
      %v1303 = vmul.f32 %v1285, %v1301
      %v1304 = vpack.c.bf16 %v1303, %v1302
      %v1305 = vld [vmem:[%s12] sm:$0xf]
      %v1306 = vld [vmem:[%s12 + $0x4] sm:$0xf]
      %v1307 = vld [vmem:[%s12 + $0x8] sm:$0xf]
      %v1308 = vld [vmem:[%s12 + $0xc] sm:$0xf]
      %v1309 = vld [vmem:[%s12 + $0x10] sm:$0xf]
      %v1310 = vld [vmem:[%s12 + $0x14] sm:$0xf]
      %v1311 = vld [vmem:[%s12 + $0x18] sm:$0xf]
      %v1312 = vld [vmem:[%s12 + $0x1c] sm:$0xf]
      %v1313 = vld [vmem:[%s12 + $0x20] sm:$0xf]
      %v1314 = vld [vmem:[%s12 + $0x24] sm:$0xf]
      %v1315 = vld [vmem:[%s12 + $0x28] sm:$0xf]
      %v1316 = vld [vmem:[%s12 + $0x2c] sm:$0xf]
      %v1317 = vld [vmem:[%s12 + $0x30] sm:$0xf]
      %v1318 = vld [vmem:[%s12 + $0x34] sm:$0xf]
      %v1319 = vld [vmem:[%s12 + $0x38] sm:$0xf]
      %v1320 = vld [vmem:[%s12 + $0x3c] sm:$0xf]
      %v1337 = vunpack.c.l.b16 %v1305
      %v1338 = vunpack.c.l.b16 %v1306
      %v1339 = vunpack.c.l.b16 %v1307
      %v1340 = vunpack.c.l.b16 %v1308
      %v1341 = vunpack.c.l.b16 %v1309
      %v1342 = vunpack.c.l.b16 %v1310
      %v1343 = vunpack.c.l.b16 %v1311
      %v1344 = vunpack.c.l.b16 %v1312
      %v1345 = vunpack.c.l.b16 %v1313
      %v1346 = vunpack.c.l.b16 %v1314
      %v1347 = vunpack.c.l.b16 %v1315
      %v1348 = vunpack.c.l.b16 %v1316
      %v1349 = vunpack.c.l.b16 %v1317
      %v1350 = vunpack.c.l.b16 %v1318
      %v1351 = vunpack.c.l.b16 %v1319
      %v1352 = vunpack.c.l.b16 %v1320
      %v1353 = vpack.c.b16 %v1338, %v1337
      %v1354 = vpack.c.b16 %v1340, %v1339
      %v1355 = vpack.c.b16 %v1342, %v1341
      %v1356 = vpack.c.b16 %v1344, %v1343
      %v1357 = vpack.c.b16 %v1346, %v1345
      %v1358 = vpack.c.b16 %v1348, %v1347
      %v1359 = vpack.c.b16 %v1350, %v1349
      %v1360 = vpack.c.b16 %v1352, %v1351
      %1369 = vmatprep.subr.bf16.mxu0 0
      %1370 = vmatpush1.bf16.msra.mxu0 %v1360
      %1371 = vmatprep.subr.bf16.mxu0 0
      %1372 = vmatpush1.bf16.msra.mxu0 %v1359
      %1373 = vmatprep.subr.bf16.mxu0 0
      %1374 = vmatpush1.bf16.msra.mxu0 %v1358
      %1375 = vmatprep.subr.bf16.mxu0 0
      %1376 = vmatpush1.bf16.msra.mxu0 %v1357
      %1377 = vmatprep.subr.bf16.mxu0 0
      %1378 = vmatpush1.bf16.msra.mxu0 %v1356
      %1379 = vmatprep.subr.bf16.mxu0 0
      %1380 = vmatpush1.bf16.msra.mxu0 %v1355
      %1381 = vmatprep.subr.bf16.mxu0 0
      %1382 = vmatpush1.bf16.msra.mxu0 %v1354
      %1383 = vmatprep.subr.bf16.mxu0 0
      %1384 = vmatpush1.bf16.msra.mxu0 %v1353
      %1385 = vmatprep.subr.bf16.mxu0 0
      %1386 = vmatpush2.bf16.msra.mxu0 0
      %1387 = vmatprep.subr.bf16.mxu0 0
      %1388 = vmatpush2.bf16.msra.mxu0 0
      %1389 = vmatprep.subr.bf16.mxu0 0
      %1390 = vmatpush2.bf16.msra.mxu0 0
      %1391 = vmatprep.subr.bf16.mxu0 0
      %1392 = vmatpush2.bf16.msra.mxu0 0
      %1393 = vmatprep.subr.bf16.mxu0 0
      %1394 = vmatpush2.bf16.msra.mxu0 0
      %1395 = vmatprep.subr.bf16.mxu0 0
      %1396 = vmatpush2.bf16.msra.mxu0 0
      %1397 = vmatprep.subr.bf16.mxu0 0
      %1398 = vmatpush2.bf16.msra.mxu0 0
      %1399 = vmatprep.subr.bf16.mxu0 0
      %1400 = vmatpush2.bf16.msra.mxu0 0
      %1401 = vmatprep.mubr.bf16.mxu0 0
      %1402 = vmatmul.mubr.bf16.gmra.mxu0 %v1304
      %v1403 = vpop.f32.mrf.mxu0
      %v1404 = vadd.f32 0.0, %v1403
      %v1405 = vpop.f32.mrf.mxu0
      %v1406 = vpop.f32.mrf.mxu0
      %v1407 = vadd.f32 0.0, %v1406
      %v1408 = vpop.f32.mrf.mxu0
      %1409 = vdwg.mxu0
      %v1410 = vadd.f32 %v1174, %v1404
      %v1411 = vadd.f32 %v1175, %v1407
      %v1412 = vld [vmem:[%s13] sm:$0x1]
      %v1414 = vlaneseq
      %v1415 = vshrl.u32 %v1414, 7
      %v1416 = vsub.s32 0, %v1415
      %v1417 = vrot.slane %v1412, %v1416
      %v1419 = vadd.f32 %v1410, %v1417
      %v1420 = vadd.f32 %v1411, %v1417
      %1421 = vst.msk [vmem:[%s467] sm:$0xff] %vm473, %v1419
      %1422 = vst.msk [vmem:[%s467 + $0x8] sm:$0xff] %vm473, %v1420
      %p1423 = scmp.lt.s32.totalorder %s25, 1
      %s1424 = scalar_select %p1423, %s25, 1
      %s1425 = smul.addr %s1424, 2
      %s1426 = smul.addr %s1425, 8
      %s1427 = scalar_lea.vmem %s14, %s1426
      // Predicated region
      $region77: #{transformer_forward.2} parent=75 // pred_check
        %p1428 = pneg %p342
      $region78: #{transformer_forward.2} parent=75 // pred_check_branch
        %1430 = sbr.rel (%p1428) target = $region80
      $region79: #{transformer_forward.2} parent=75 // pred_region
        _
      $region80: #{transformer_forward.2} parent=75 // pred_fallthru
        _
    $region76: #{transformer_forward.2} parent=5 // pred_fallthru
      _
    %p1431 = scmp.le.s32.totalorder 2, %s20
    // Predicated region
    $region81: #{transformer_forward.2} parent=5 // pred_check
      %p1432 = pneg %p1431
    $region82: #{transformer_forward.2} parent=5 // pred_check_branch
      %1434 = sbr.rel (%p1432) target = $region84
    $region83: #{transformer_forward.2} parent=5 // pred_region
      %s1435 = ssub.s32 %s20, 2
      // Predicated region
      $region85: #{transformer_forward.2} parent=83 // pred_check
        %p1436 = pneg %p348
      $region86: #{transformer_forward.2} parent=83 // pred_check_branch
        %1438 = sbr.rel (%p1436) target = $region88
      $region87: #{transformer_forward.2} parent=83 // pred_region
        %p1439 = scmp.lt.s32.totalorder %s26, 1
        %s1440 = scalar_select %p1439, %s26, 1
        %s1441 = smul.addr %s1440, 2
        %s1442 = smul.addr %s1441, 8
        %s1443 = scalar_lea.vmem %s14, %s1442
      $region88: #{transformer_forward.2} parent=83 // pred_fallthru
        _
    $region84: #{transformer_forward.2} parent=5 // pred_fallthru
      _
  $region6: #{transformer_forward.2} parent=0 // loop_footer
    %s24 = sadd.s32 1, %s20
  $region7: #{transformer_forward.2} parent=0 // loop_footer_branch
    %19 = sbr.rel target = $region3
  $region8: #{transformer_forward.2} parent=0 // loop_exit
    _

</llo_original>
